<compile_context>
chip_gen: v5e
topology: v5e:2x2
jax: 0.10.0
libtpu: 0.0.40
codegen_flags: <defaults>
</compile_context>

<pallas_src>
import functools

import jax
import jax.numpy as jnp
from jax.experimental import pallas as pl
from jax.experimental.pallas import tpu as pltpu


# ----------------------------------------------------------------------------
# helpers
# ----------------------------------------------------------------------------
def _round_up(x, m):
    return (x + m - 1) // m * m


def _choose_row_tile(ho, wop, n_batch, target_rows=1024):
    """Largest th dividing ho with th*wop ~<= target_rows GEMM rows per step,
    keeping at least two grid steps when possible (v7x has 2 TensorCores)."""
    cand = max(1, min(ho, target_rows // max(wop, 1)))
    if n_batch * ((ho + cand - 1) // cand) < 2 and ho >= 2:
        cand = max(1, ho // 2)
    for th in range(cand, 0, -1):
        if ho % th == 0:
            return th
    return ho


def _choose_sub_tile(th, wop, target_rows=256):
    """Sub-tile of th so the f32 accumulator stays <= ~target_rows GEMM rows."""
    cand = max(1, min(th, target_rows // max(wop, 1)))
    for t in range(cand, 0, -1):
        if th % t == 0:
            return t
    return 1


_SINGLE_BUFFER = None


def _single_buffer_mode():
    """pl.Buffered(1) = single buffering for operands whose block is invariant
    over the inner grid axis (no pointless double buffering -> half the VMEM).
    Probed once so we degrade gracefully to default double buffering if this
    JAX/Mosaic build rejects it."""
    global _SINGLE_BUFFER
    if _SINGLE_BUFFER is not None:
        return _SINGLE_BUFFER or None
    try:
        def _k(x_ref, w_ref, o_ref):
            o_ref[...] = x_ref[...] + w_ref[...]

        x = jnp.arange(16 * 128, dtype=jnp.float32).reshape(16, 128)
        w = jnp.ones((8, 128), jnp.float32)
        out = pl.pallas_call(
            _k,
            out_shape=jax.ShapeDtypeStruct((16, 128), jnp.float32),
            grid=(2,),
            in_specs=[
                pl.BlockSpec((8, 128), lambda i: (i, 0),
                             pipeline_mode=pl.Buffered(1)),
                pl.BlockSpec((8, 128), lambda i: (0, 0),
                             pipeline_mode=pl.Buffered(1)),
            ],
            out_specs=pl.BlockSpec((8, 128), lambda i: (i, 0)),
        )(x, w)
        ok = bool(jnp.array_equal(jax.block_until_ready(out), x + w))
        _SINGLE_BUFFER = pl.Buffered(1) if ok else False
    except Exception:
        _SINGLE_BUFFER = False
    return _SINGLE_BUFFER or None


# ----------------------------------------------------------------------------
# Pallas kernel: fused (<=3 tap matmuls) + bias + LeakyReLU(0.2)
# ----------------------------------------------------------------------------
def _dis_conv_kernel(x_ref, w_ref, b_ref, o_ref, *, th, th_sub, wop, kf, cp, taps):
    # x_ref: (1, Hx, wop, kf)   dw-folded (and, for taps==1, dh-folded)
    #                           space-to-depth image of one batch element.
    # w_ref: (taps, kf, cp)     phase-folded 5x5/stride-2 weights (grid-invariant)
    # b_ref: (1, cp)            zero-padded bias
    # o_ref: (1, th*wop, cp)    lane-dense output tile (flattened rows)
    t = pl.program_id(1)
    row0 = t * th
    bias = b_ref[...]

    # Static sub-tile loop keeps the f32 accumulator small (<= ~256 rows) so
    # partial sums stay close to the vregs / MXU result buffer.
    for s in range(th // th_sub):
        acc = jnp.zeros((th_sub * wop, cp), jnp.float32)
        for dh in range(taps):                       # taps in {1, 3}, unrolled
            xs = x_ref[0, pl.ds(row0 + s * th_sub + dh, th_sub), :, :]
            acc = acc + jnp.dot(xs.reshape(th_sub * wop, kf), w_ref[dh],
                                preferred_element_type=jnp.float32)
        y = acc + bias
        y = jnp.where(y > 0, y, 0.2 * y)             # LeakyReLU(0.2)
        o_ref[0, pl.ds(s * th_sub * wop, th_sub * wop), :] = y.astype(o_ref.dtype)


def dis_conv_pallas(x_nhwc, w, b, *, mxu_dtype=jnp.bfloat16, out_dtype=None):
    """One dis_conv layer: Conv2d(k=5, s=2, p=2) + LeakyReLU(0.2).

    x_nhwc: (N, H, W, Cin)
    w:      (5, 5, Cin, Cout)  (HWIO)
    b:      (Cout,)
    returns (N, Ho, Wo, Cout) in out_dtype (default: mxu_dtype).
    """
    if out_dtype is None:
        out_dtype = mxu_dtype
    N, H, W, Cin = x_nhwc.shape
    KH, KW, _, Cout = w.shape
    assert (KH, KW) == (5, 5)
    stride, pad = 2, 2
    Ho = (H + 2 * pad - KH) // stride + 1
    Wo = (W + 2 * pad - KW) // stride + 1

    Cp = _round_up(Cout, 128)           # lane-dense stores / full MXU columns
    Wop = _round_up(Wo, 8)              # sublane-aligned rows

    # ---- space-to-depth: fold the stride-2 phases into channels -------------
    # xs[n, a, b, (ph, pw, c)] = padded_x[n, 2a + ph, 2b + pw, c]
    Hs, Ws = Ho + 2, Wop + 2
    pad_b = 2 * Hs - H - pad            # so padded height == 2*Hs
    pad_r = 2 * Ws - W - pad            # so padded width  == 2*Ws
    xp = jnp.pad(x_nhwc.astype(mxu_dtype),
                 ((0, 0), (pad, pad_b), (pad, pad_r), (0, 0)))
    Kc = 4 * Cin
    xs = xp.reshape(N, Hs, 2, Ws, 2, Cin)
    xs = jnp.transpose(xs, (0, 1, 3, 2, 4, 5)).reshape(N, Hs, Ws, Kc)

    # ---- fold the 3 dw taps into the contraction -----------------------------
    # (removes every sublane-misaligned W slice from the kernel; only aligned
    #  H-row shifts remain)
    xs = jnp.concatenate([xs[:, :, dw:dw + Wop, :] for dw in range(3)], axis=-1)
    Kf = 3 * Kc                                        # (N, Hs, Wop, 3*Kc)

    # ---- phase-folded weights: w2[dh, (dw, ph, pw, c), co] -------------------
    w6 = jnp.pad(w, ((0, 1), (0, 1), (0, 0), (0, Cp - Cout))).astype(mxu_dtype)
    w2 = jnp.transpose(w6.reshape(3, 2, 3, 2, Cin, Cp), (0, 2, 1, 3, 4, 5))
    w2 = w2.reshape(3, Kf, Cp)
    b2 = jnp.pad(b.astype(jnp.float32), (0, Cp - Cout)).reshape(1, Cp)

    # ---- small-Cin layers (layer 1): fold the dh taps too -> one big matmul --
    if Kf < 128:
        xs = jnp.concatenate([xs[:, dh:dh + Ho] for dh in range(3)], axis=-1)
        w2 = w2.reshape(1, 3 * Kf, Cp)
        Kf, taps, Hx = 3 * Kf, 1, Ho
    else:
        taps, Hx = 3, Hs

    # ---- tiling ---------------------------------------------------------------
    th = _choose_row_tile(Ho, Wop, N)
    th_sub = _choose_sub_tile(th, Wop)
    n_t = Ho // th
    kernel = functools.partial(_dis_conv_kernel, th=th, th_sub=th_sub,
                               wop=Wop, kf=Kf, cp=Cp, taps=taps)

    sb = _single_buffer_mode()
    spec_kw = {"pipeline_mode": sb} if sb is not None else {}
    n_bufs = 1 if sb is not None else 2

    # ---- VMEM budget / cost estimate (derived, not flat) ----------------------
    in_item = jnp.dtype(mxu_dtype).itemsize
    out_item = jnp.dtype(out_dtype).itemsize
    x_block = Hx * Wop * Kf * in_item
    w_bytes = taps * Kf * Cp * in_item
    out_block = th * Wop * Cp * out_item
    acc_bytes = th_sub * Wop * Cp * 4
    vmem_need = (n_bufs * (x_block + w_bytes + Cp * 4)
                 + 2 * out_block + 2 * acc_bytes)
    vmem_limit = int(min(max(vmem_need + (8 << 20), 16 << 20), 60 << 20))
    # TODO(synk): when x_block alone approaches v7x's 64 MiB (very large spatial
    # inputs) switch to H-halo tiling with manual DMA instead of raising limits.

    flops = 2 * N * Ho * Wo * (25 * Cin) * Cout + 2 * N * Ho * Wo * Cout
    bytes_accessed = (N * x_block + w_bytes + Cp * 4 + N * n_t * out_block)

    out = pl.pallas_call(
        kernel,
        out_shape=jax.ShapeDtypeStruct((N, Ho * Wop, Cp), out_dtype),
        grid=(N, n_t),
        in_specs=[
            # Whole folded image of batch element n: invariant over the inner
            # row-tile axis -> fetched once per n; single buffer when supported.
            pl.BlockSpec((1, Hx, Wop, Kf), lambda n, t: (n, 0, 0, 0), **spec_kw),
            # Grid-invariant weights / bias: single buffer when supported.
            pl.BlockSpec((taps, Kf, Cp), lambda n, t: (0, 0, 0), **spec_kw),
            pl.BlockSpec((1, Cp), lambda n, t: (0, 0), **spec_kw),
        ],
        out_specs=pl.BlockSpec((1, th * Wop, Cp), lambda n, t: (n, t, 0)),
        compiler_params=pltpu.CompilerParams(
            dimension_semantics=("parallel", "parallel"),
            vmem_limit_bytes=vmem_limit),
        cost_estimate=pl.CostEstimate(flops=flops, transcendentals=0,
                                      bytes_accessed=bytes_accessed),
    )(xs, w2, b2)

    # Drop the alignment padding (padded channels are exactly zero).
    return out.reshape(N, Ho, Wop, Cp)[:, :, :Wo, :Cout]


# ----------------------------------------------------------------------------
# DisConvModule
# ----------------------------------------------------------------------------
def init_dis_conv_module_params(key, input_dim, cnum, dtype=jnp.float32):
    """Deterministic parameter init. Weight layout HWIO: (5, 5, Cin, Cout)."""
    dims = [(input_dim, cnum), (cnum, 2 * cnum),
            (2 * cnum, 4 * cnum), (4 * cnum, 4 * cnum)]
    params = []
    for i, (cin, cout) in enumerate(dims):
        kw_key, kb_key = jax.random.split(jax.random.fold_in(key, i))
        fan_in = 5 * 5 * cin
        w = jax.random.normal(kw_key, (5, 5, cin, cout), dtype) / jnp.sqrt(fan_in)
        b = 0.01 * jax.random.normal(kb_key, (cout,), dtype)
        params.append((w, b))
    return params


def dis_conv_module_forward(x_nchw, params, mxu_dtype=jnp.bfloat16):
    """x_nchw: (N, C, H, W) -> (N, 4*cnum, H/16, W/16) float32 (PyTorch layout).

    mxu_dtype: bf16 (default; MXU-native on v5e/v6e/v7x and halves activation
    HBM/VMEM traffic) or f32 (bit-closer to the XLA reference).  Accumulation,
    bias and LeakyReLU math are always f32.
    """
    x = jnp.transpose(x_nchw, (0, 2, 3, 1))          # NCHW -> NHWC
    n_layers = len(params)
    for li, (w, b) in enumerate(params):
        # Intermediate activations stay in mxu_dtype (bf16 path) to halve the
        # inter-layer HBM round-trip; the final layer emits f32.
        out_dtype = jnp.float32 if li == n_layers - 1 else mxu_dtype
        x = dis_conv_pallas(x, w, b, mxu_dtype=mxu_dtype, out_dtype=out_dtype)
    return jnp.transpose(x, (0, 3, 1, 2))            # NHWC -> NCHW


# ----------------------------------------------------------------------------
# Reference (pure JAX/XLA) for validation
# ----------------------------------------------------------------------------
def _reference_forward(x_nchw, params):
    x = x_nchw
    for (w, b) in params:
        y = jax.lax.conv_general_dilated(
            x, w, window_strides=(2, 2), padding=((2, 2), (2, 2)),
            dimension_numbers=("NCHW", "HWIO", "NCHW"))
        y = y + b.reshape(1, -1, 1, 1)
        x = jnp.where(y > 0, y, 0.2 * y)
    return x


if __name__ == "__main__":
    key = jax.random.PRNGKey(0)
    x_key, p_key = jax.random.split(key)

    N, input_dim, H, W = 2, 4, 32, 32
    cnum = 8

    x = jax.random.normal(x_key, (N, input_dim, H, W), jnp.float32)
    params = init_dis_conv_module_params(p_key, input_dim, cnum)

    ref = jax.block_until_ready(_reference_forward(x, params))

    # f32 MXU-operand path: matches the XLA reference tightly.
    fwd_f32 = jax.jit(functools.partial(dis_conv_module_forward,
                                        mxu_dtype=jnp.float32))
    out_f32 = jax.block_until_ready(fwd_f32(x, params))
    assert out_f32.shape == (N, 4 * cnum, H // 16, W // 16), out_f32.shape
    assert jnp.allclose(out_f32, ref, rtol=1e-3, atol=1e-3), \
        float(jnp.max(jnp.abs(out_f32 - ref)))

    # Default bf16 MXU-operand path (recommended on v5e/v6e/v7x); looser tol.
    fwd = jax.jit(dis_conv_module_forward)
    out = jax.block_until_ready(fwd(x, params))
    assert out.dtype == jnp.float32 and out.shape == out_f32.shape
    assert jnp.allclose(out, ref, rtol=1e-1, atol=1e-1), \
        float(jnp.max(jnp.abs(out - ref)))

    print("KERNEL_OK")
</pallas_src>

<mosaic_0001>
module attributes {stable_mosaic.version = 11 : i64} {
  func.func @_dis_conv_kernel(%arg0: i32, %arg1: i32, %arg2: memref<1x16x16x144xf32, #tpu.memory_space<vmem>>, %arg3: memref<1x144x128xf32, #tpu.memory_space<vmem>>, %arg4: memref<1x128xf32, #tpu.memory_space<vmem>>, %arg5: memref<1x256x128xf32, #tpu.memory_space<vmem>>) attributes {dimension_semantics = [#tpu.dimension_semantics<parallel>, #tpu.dimension_semantics<parallel>], iteration_bounds = array<i64: 2, 1>, scalar_prefetch = 0 : i64, scratch_operands = 0 : i64, tpu.core_type = #tpu.core_type<tc>, window_params = [{transform_indices = @transform_0, window_bounds = array<i64: 1, 16, 16, 144>}, {pipeline_mode = #tpu.pipeline_mode<synchronous>, transform_indices = @transform_1, window_bounds = array<i64: 1, 144, 128>}, {pipeline_mode = #tpu.pipeline_mode<synchronous>, transform_indices = @transform_2, window_bounds = array<i64: 1, 128>}, {transform_indices = @transform_3, window_bounds = array<i64: 1, 256, 128>}]} {
    %c16_i32 = arith.constant 16 : i32
    %0 = arith.muli %arg1, %c16_i32 : i32
    %c0 = arith.constant 0 : index
    %c0_0 = arith.constant 0 : index
    %1 = vector.load %arg4[%c0, %c0_0] : memref<1x128xf32, #tpu.memory_space<vmem>>, vector<1x128xf32>
    %cst = arith.constant 0.000000e+00 : f32
    %2 = vector.broadcast %cst : f32 to vector<256x128xf32>
    %c0_i32 = arith.constant 0 : i32
    %3 = arith.addi %0, %c0_i32 : i32
    %c0_i32_1 = arith.constant 0 : i32
    %4 = arith.addi %3, %c0_i32_1 : i32
    %c0_2 = arith.constant 0 : index
    %5 = arith.index_cast %4 : i32 to index
    %c0_3 = arith.constant 0 : index
    %c0_4 = arith.constant 0 : index
    %6 = vector.load %arg2[%c0_2, %5, %c0_3, %c0_4] : memref<1x16x16x144xf32, #tpu.memory_space<vmem>>, vector<1x16x16x144xf32>
    %7 = vector.shape_cast %6 : vector<1x16x16x144xf32> to vector<16x16x144xf32>
    %8 = vector.shape_cast %7 : vector<16x16x144xf32> to vector<256x144xf32>
    %c0_5 = arith.constant 0 : index
    %c0_6 = arith.constant 0 : index
    %c0_7 = arith.constant 0 : index
    %9 = vector.load %arg3[%c0_5, %c0_6, %c0_7] : memref<1x144x128xf32, #tpu.memory_space<vmem>>, vector<1x144x128xf32>
    %10 = vector.shape_cast %9 : vector<1x144x128xf32> to vector<144x128xf32>
    %cst_8 = arith.constant dense<0.000000e+00> : vector<256x128xf32>
    %11 = tpu.matmul %8, %10, %cst_8 {dimension_numbers = #tpu.dot_dimension_numbers<[1], [0], [0], [1], [0, 0, 1, 1], [], []>} : vector<256x144xf32>, vector<144x128xf32>, vector<256x128xf32> -> vector<256x128xf32>
    %12 = arith.addf %2, %11 : vector<256x128xf32>
    %13 = vector.broadcast %1 : vector<1x128xf32> to vector<256x128xf32>
    %14 = arith.addf %12, %13 : vector<256x128xf32>
    %cst_9 = arith.constant 0.000000e+00 : f32
    %15 = vector.broadcast %cst_9 : f32 to vector<256x128xf32>
    %16 = arith.cmpf ogt, %14, %15 : vector<256x128xf32>
    %cst_10 = arith.constant 2.000000e-01 : f32
    %17 = vector.broadcast %cst_10 : f32 to vector<256x128xf32>
    %18 = arith.mulf %17, %14 : vector<256x128xf32>
    %19 = arith.select %16, %14, %18 : vector<256x128xi1>, vector<256x128xf32>
    %c0_11 = arith.constant 0 : index
    %c0_12 = arith.constant 0 : index
    %c0_13 = arith.constant 0 : index
    %20 = vector.load %arg5[%c0_11, %c0_12, %c0_13] : memref<1x256x128xf32, #tpu.memory_space<vmem>>, vector<1x256x128xf32>
    %21 = vector.shape_cast %20 : vector<1x256x128xf32> to vector<256x128xf32>
    %22 = vector.shape_cast %19 : vector<256x128xf32> to vector<1x256x128xf32>
    tpu.vector_store %arg5[%c0_11, %c0_12, %c0_13], %22 {strides = array<i32>} : memref<1x256x128xf32, #tpu.memory_space<vmem>>, vector<1x256x128xf32>,
    return
  }
  func.func @transform_0(%arg0: i32, %arg1: i32) -> (i32, i32, i32, i32) {
    %c0_i32 = arith.constant 0 : i32
    %c0_i32_0 = arith.constant 0 : i32
    %c0_i32_1 = arith.constant 0 : i32
    %c0_i32_2 = arith.constant 0 : i32
    return %arg0, %c0_i32, %c0_i32_0, %c0_i32_1 : i32, i32, i32, i32
  }
  func.func @transform_1(%arg0: i32, %arg1: i32) -> (i32, i32, i32) {
    %c0_i32 = arith.constant 0 : i32
    %c0_i32_0 = arith.constant 0 : i32
    %c0_i32_1 = arith.constant 0 : i32
    %c0_i32_2 = arith.constant 0 : i32
    return %c0_i32, %c0_i32_0, %c0_i32_1 : i32, i32, i32
  }
  func.func @transform_2(%arg0: i32, %arg1: i32) -> (i32, i32) {
    %c0_i32 = arith.constant 0 : i32
    %c0_i32_0 = arith.constant 0 : i32
    %c0_i32_1 = arith.constant 0 : i32
    return %c0_i32, %c0_i32_0 : i32, i32
  }
  func.func @transform_3(%arg0: i32, %arg1: i32) -> (i32, i32, i32) {
    %c0_i32 = arith.constant 0 : i32
    %c0_i32_0 = arith.constant 0 : i32
    return %arg0, %arg1, %c0_i32 : i32, i32, i32
  }
}

module attributes {stable_mosaic.version = 11 : i64} {
  func.func @_dis_conv_kernel(%arg0: i32, %arg1: i32, %arg2: memref<1x8x8x288xf32, #tpu.memory_space<vmem>>, %arg3: memref<1x288x128xf32, #tpu.memory_space<vmem>>, %arg4: memref<1x128xf32, #tpu.memory_space<vmem>>, %arg5: memref<1x64x128xf32, #tpu.memory_space<vmem>>) attributes {dimension_semantics = [#tpu.dimension_semantics<parallel>, #tpu.dimension_semantics<parallel>], iteration_bounds = array<i64: 2, 1>, scalar_prefetch = 0 : i64, scratch_operands = 0 : i64, tpu.core_type = #tpu.core_type<tc>, window_params = [{transform_indices = @transform_0, window_bounds = array<i64: 1, 8, 8, 288>}, {pipeline_mode = #tpu.pipeline_mode<synchronous>, transform_indices = @transform_1, window_bounds = array<i64: 1, 288, 128>}, {pipeline_mode = #tpu.pipeline_mode<synchronous>, transform_indices = @transform_2, window_bounds = array<i64: 1, 128>}, {transform_indices = @transform_3, window_bounds = array<i64: 1, 64, 128>}]} {
    %c8_i32 = arith.constant 8 : i32
    %0 = arith.muli %arg1, %c8_i32 : i32
    %c0 = arith.constant 0 : index
    %c0_0 = arith.constant 0 : index
    %1 = vector.load %arg4[%c0, %c0_0] : memref<1x128xf32, #tpu.memory_space<vmem>>, vector<1x128xf32>
    %cst = arith.constant 0.000000e+00 : f32
    %2 = vector.broadcast %cst : f32 to vector<64x128xf32>
    %c0_i32 = arith.constant 0 : i32
    %3 = arith.addi %0, %c0_i32 : i32
    %c0_i32_1 = arith.constant 0 : i32
    %4 = arith.addi %3, %c0_i32_1 : i32
    %c0_2 = arith.constant 0 : index
    %5 = arith.index_cast %4 : i32 to index
    %c0_3 = arith.constant 0 : index
    %c0_4 = arith.constant 0 : index
    %6 = vector.load %arg2[%c0_2, %5, %c0_3, %c0_4] : memref<1x8x8x288xf32, #tpu.memory_space<vmem>>, vector<1x8x8x288xf32>
    %7 = vector.shape_cast %6 : vector<1x8x8x288xf32> to vector<8x8x288xf32>
    %8 = vector.shape_cast %7 : vector<8x8x288xf32> to vector<64x288xf32>
    %c0_5 = arith.constant 0 : index
    %c0_6 = arith.constant 0 : index
    %c0_7 = arith.constant 0 : index
    %9 = vector.load %arg3[%c0_5, %c0_6, %c0_7] : memref<1x288x128xf32, #tpu.memory_space<vmem>>, vector<1x288x128xf32>
    %10 = vector.shape_cast %9 : vector<1x288x128xf32> to vector<288x128xf32>
    %cst_8 = arith.constant dense<0.000000e+00> : vector<64x128xf32>
    %11 = tpu.matmul %8, %10, %cst_8 {dimension_numbers = #tpu.dot_dimension_numbers<[1], [0], [0], [1], [0, 0, 1, 1], [], []>} : vector<64x288xf32>, vector<288x128xf32>, vector<64x128xf32> -> vector<64x128xf32>
    %12 = arith.addf %2, %11 : vector<64x128xf32>
    %13 = vector.broadcast %1 : vector<1x128xf32> to vector<64x128xf32>
    %14 = arith.addf %12, %13 : vector<64x128xf32>
    %cst_9 = arith.constant 0.000000e+00 : f32
    %15 = vector.broadcast %cst_9 : f32 to vector<64x128xf32>
    %16 = arith.cmpf ogt, %14, %15 : vector<64x128xf32>
    %cst_10 = arith.constant 2.000000e-01 : f32
    %17 = vector.broadcast %cst_10 : f32 to vector<64x128xf32>
    %18 = arith.mulf %17, %14 : vector<64x128xf32>
    %19 = arith.select %16, %14, %18 : vector<64x128xi1>, vector<64x128xf32>
    %c0_11 = arith.constant 0 : index
    %c0_12 = arith.constant 0 : index
    %c0_13 = arith.constant 0 : index
    %20 = vector.load %arg5[%c0_11, %c0_12, %c0_13] : memref<1x64x128xf32, #tpu.memory_space<vmem>>, vector<1x64x128xf32>
    %21 = vector.shape_cast %20 : vector<1x64x128xf32> to vector<64x128xf32>
    %22 = vector.shape_cast %19 : vector<64x128xf32> to vector<1x64x128xf32>
    tpu.vector_store %arg5[%c0_11, %c0_12, %c0_13], %22 {strides = array<i32>} : memref<1x64x128xf32, #tpu.memory_space<vmem>>, vector<1x64x128xf32>,
    return
  }
  func.func @transform_0(%arg0: i32, %arg1: i32) -> (i32, i32, i32, i32) {
    %c0_i32 = arith.constant 0 : i32
    %c0_i32_0 = arith.constant 0 : i32
    %c0_i32_1 = arith.constant 0 : i32
    %c0_i32_2 = arith.constant 0 : i32
    return %arg0, %c0_i32, %c0_i32_0, %c0_i32_1 : i32, i32, i32, i32
  }
  func.func @transform_1(%arg0: i32, %arg1: i32) -> (i32, i32, i32) {
    %c0_i32 = arith.constant 0 : i32
    %c0_i32_0 = arith.constant 0 : i32
    %c0_i32_1 = arith.constant 0 : i32
    %c0_i32_2 = arith.constant 0 : i32
    return %c0_i32, %c0_i32_0, %c0_i32_1 : i32, i32, i32
  }
  func.func @transform_2(%arg0: i32, %arg1: i32) -> (i32, i32) {
    %c0_i32 = arith.constant 0 : i32
    %c0_i32_0 = arith.constant 0 : i32
    %c0_i32_1 = arith.constant 0 : i32
    return %c0_i32, %c0_i32_0 : i32, i32
  }
  func.func @transform_3(%arg0: i32, %arg1: i32) -> (i32, i32, i32) {
    %c0_i32 = arith.constant 0 : i32
    %c0_i32_0 = arith.constant 0 : i32
    return %arg0, %arg1, %c0_i32 : i32, i32, i32
  }
}

module attributes {stable_mosaic.version = 11 : i64} {
  func.func @_dis_conv_kernel(%arg0: i32, %arg1: i32, %arg2: memref<1x6x8x192xf32, #tpu.memory_space<vmem>>, %arg3: memref<3x192x128xf32, #tpu.memory_space<vmem>>, %arg4: memref<1x128xf32, #tpu.memory_space<vmem>>, %arg5: memref<1x32x128xf32, #tpu.memory_space<vmem>>) attributes {dimension_semantics = [#tpu.dimension_semantics<parallel>, #tpu.dimension_semantics<parallel>], iteration_bounds = array<i64: 2, 1>, scalar_prefetch = 0 : i64, scratch_operands = 0 : i64, tpu.core_type = #tpu.core_type<tc>, window_params = [{transform_indices = @transform_0, window_bounds = array<i64: 1, 6, 8, 192>}, {pipeline_mode = #tpu.pipeline_mode<synchronous>, transform_indices = @transform_1, window_bounds = array<i64: 3, 192, 128>}, {pipeline_mode = #tpu.pipeline_mode<synchronous>, transform_indices = @transform_2, window_bounds = array<i64: 1, 128>}, {transform_indices = @transform_3, window_bounds = array<i64: 1, 32, 128>}]} {
    %c4_i32 = arith.constant 4 : i32
    %0 = arith.muli %arg1, %c4_i32 : i32
    %c0 = arith.constant 0 : index
    %c0_0 = arith.constant 0 : index
    %1 = vector.load %arg4[%c0, %c0_0] : memref<1x128xf32, #tpu.memory_space<vmem>>, vector<1x128xf32>
    %cst = arith.constant 0.000000e+00 : f32
    %2 = vector.broadcast %cst : f32 to vector<32x128xf32>
    %c0_i32 = arith.constant 0 : i32
    %3 = arith.addi %0, %c0_i32 : i32
    %c0_i32_1 = arith.constant 0 : i32
    %4 = arith.addi %3, %c0_i32_1 : i32
    %c0_2 = arith.constant 0 : index
    %5 = arith.index_cast %4 : i32 to index
    %c0_3 = arith.constant 0 : index
    %c0_4 = arith.constant 0 : index
    %6 = vector.load %arg2[%c0_2, %5, %c0_3, %c0_4] : memref<1x6x8x192xf32, #tpu.memory_space<vmem>>, vector<1x4x8x192xf32>
    %7 = vector.shape_cast %6 : vector<1x4x8x192xf32> to vector<4x8x192xf32>
    %8 = vector.shape_cast %7 : vector<4x8x192xf32> to vector<32x192xf32>
    %c0_5 = arith.constant 0 : index
    %c0_6 = arith.constant 0 : index
    %c0_7 = arith.constant 0 : index
    %9 = vector.load %arg3[%c0_5, %c0_6, %c0_7] : memref<3x192x128xf32, #tpu.memory_space<vmem>>, vector<1x192x128xf32>
    %10 = vector.shape_cast %9 : vector<1x192x128xf32> to vector<192x128xf32>
    %cst_8 = arith.constant dense<0.000000e+00> : vector<32x128xf32>
    %11 = tpu.matmul %8, %10, %cst_8 {dimension_numbers = #tpu.dot_dimension_numbers<[1], [0], [0], [1], [0, 0, 1, 1], [], []>} : vector<32x192xf32>, vector<192x128xf32>, vector<32x128xf32> -> vector<32x128xf32>
    %12 = arith.addf %2, %11 : vector<32x128xf32>
    %c0_i32_9 = arith.constant 0 : i32
    %13 = arith.addi %0, %c0_i32_9 : i32
    %c1_i32 = arith.constant 1 : i32
    %14 = arith.addi %13, %c1_i32 : i32
    %c0_10 = arith.constant 0 : index
    %15 = arith.index_cast %14 : i32 to index
    %c0_11 = arith.constant 0 : index
    %c0_12 = arith.constant 0 : index
    %16 = vector.load %arg2[%c0_10, %15, %c0_11, %c0_12] : memref<1x6x8x192xf32, #tpu.memory_space<vmem>>, vector<1x4x8x192xf32>
    %17 = vector.shape_cast %16 : vector<1x4x8x192xf32> to vector<4x8x192xf32>
    %18 = vector.shape_cast %17 : vector<4x8x192xf32> to vector<32x192xf32>
    %c1 = arith.constant 1 : index
    %c0_13 = arith.constant 0 : index
    %c0_14 = arith.constant 0 : index
    %19 = vector.load %arg3[%c1, %c0_13, %c0_14] : memref<3x192x128xf32, #tpu.memory_space<vmem>>, vector<1x192x128xf32>
    %20 = vector.shape_cast %19 : vector<1x192x128xf32> to vector<192x128xf32>
    %cst_15 = arith.constant dense<0.000000e+00> : vector<32x128xf32>
    %21 = tpu.matmul %18, %20, %cst_15 {dimension_numbers = #tpu.dot_dimension_numbers<[1], [0], [0], [1], [0, 0, 1, 1], [], []>} : vector<32x192xf32>, vector<192x128xf32>, vector<32x128xf32> -> vector<32x128xf32>
    %22 = arith.addf %12, %21 : vector<32x128xf32>
    %c0_i32_16 = arith.constant 0 : i32
    %23 = arith.addi %0, %c0_i32_16 : i32
    %c2_i32 = arith.constant 2 : i32
    %24 = arith.addi %23, %c2_i32 : i32
    %c0_17 = arith.constant 0 : index
    %25 = arith.index_cast %24 : i32 to index
    %c0_18 = arith.constant 0 : index
    %c0_19 = arith.constant 0 : index
    %26 = vector.load %arg2[%c0_17, %25, %c0_18, %c0_19] : memref<1x6x8x192xf32, #tpu.memory_space<vmem>>, vector<1x4x8x192xf32>
    %27 = vector.shape_cast %26 : vector<1x4x8x192xf32> to vector<4x8x192xf32>
    %28 = vector.shape_cast %27 : vector<4x8x192xf32> to vector<32x192xf32>
    %c2 = arith.constant 2 : index
    %c0_20 = arith.constant 0 : index
    %c0_21 = arith.constant 0 : index
    %29 = vector.load %arg3[%c2, %c0_20, %c0_21] : memref<3x192x128xf32, #tpu.memory_space<vmem>>, vector<1x192x128xf32>
    %30 = vector.shape_cast %29 : vector<1x192x128xf32> to vector<192x128xf32>
    %cst_22 = arith.constant dense<0.000000e+00> : vector<32x128xf32>
    %31 = tpu.matmul %28, %30, %cst_22 {dimension_numbers = #tpu.dot_dimension_numbers<[1], [0], [0], [1], [0, 0, 1, 1], [], []>} : vector<32x192xf32>, vector<192x128xf32>, vector<32x128xf32> -> vector<32x128xf32>
    %32 = arith.addf %22, %31 : vector<32x128xf32>
    %33 = vector.broadcast %1 : vector<1x128xf32> to vector<32x128xf32>
    %34 = arith.addf %32, %33 : vector<32x128xf32>
    %cst_23 = arith.constant 0.000000e+00 : f32
    %35 = vector.broadcast %cst_23 : f32 to vector<32x128xf32>
    %36 = arith.cmpf ogt, %34, %35 : vector<32x128xf32>
    %cst_24 = arith.constant 2.000000e-01 : f32
    %37 = vector.broadcast %cst_24 : f32 to vector<32x128xf32>
    %38 = arith.mulf %37, %34 : vector<32x128xf32>
    %39 = arith.select %36, %34, %38 : vector<32x128xi1>, vector<32x128xf32>
    %c0_25 = arith.constant 0 : index
    %c0_26 = arith.constant 0 : index
    %c0_27 = arith.constant 0 : index
    %40 = vector.load %arg5[%c0_25, %c0_26, %c0_27] : memref<1x32x128xf32, #tpu.memory_space<vmem>>, vector<1x32x128xf32>
    %41 = vector.shape_cast %40 : vector<1x32x128xf32> to vector<32x128xf32>
    %42 = vector.shape_cast %39 : vector<32x128xf32> to vector<1x32x128xf32>
    tpu.vector_store %arg5[%c0_25, %c0_26, %c0_27], %42 {strides = array<i32>} : memref<1x32x128xf32, #tpu.memory_space<vmem>>, vector<1x32x128xf32>,
    return
  }
  func.func @transform_0(%arg0: i32, %arg1: i32) -> (i32, i32, i32, i32) {
    %c0_i32 = arith.constant 0 : i32
    %c0_i32_0 = arith.constant 0 : i32
    %c0_i32_1 = arith.constant 0 : i32
    %c0_i32_2 = arith.constant 0 : i32
    return %arg0, %c0_i32, %c0_i32_0, %c0_i32_1 : i32, i32, i32, i32
  }
  func.func @transform_1(%arg0: i32, %arg1: i32) -> (i32, i32, i32) {
    %c0_i32 = arith.constant 0 : i32
    %c0_i32_0 = arith.constant 0 : i32
    %c0_i32_1 = arith.constant 0 : i32
    %c0_i32_2 = arith.constant 0 : i32
    return %c0_i32, %c0_i32_0, %c0_i32_1 : i32, i32, i32
  }
  func.func @transform_2(%arg0: i32, %arg1: i32) -> (i32, i32) {
    %c0_i32 = arith.constant 0 : i32
    %c0_i32_0 = arith.constant 0 : i32
    %c0_i32_1 = arith.constant 0 : i32
    return %c0_i32, %c0_i32_0 : i32, i32
  }
  func.func @transform_3(%arg0: i32, %arg1: i32) -> (i32, i32, i32) {
    %c0_i32 = arith.constant 0 : i32
    %c0_i32_0 = arith.constant 0 : i32
    return %arg0, %arg1, %c0_i32 : i32, i32, i32
  }
}

module attributes {stable_mosaic.version = 11 : i64} {
  func.func @_dis_conv_kernel(%arg0: i32, %arg1: i32, %arg2: memref<1x4x8x384xf32, #tpu.memory_space<vmem>>, %arg3: memref<3x384x128xf32, #tpu.memory_space<vmem>>, %arg4: memref<1x128xf32, #tpu.memory_space<vmem>>, %arg5: memref<1x16x128xf32, #tpu.memory_space<vmem>>) attributes {dimension_semantics = [#tpu.dimension_semantics<parallel>, #tpu.dimension_semantics<parallel>], iteration_bounds = array<i64: 2, 1>, scalar_prefetch = 0 : i64, scratch_operands = 0 : i64, tpu.core_type = #tpu.core_type<tc>, window_params = [{transform_indices = @transform_0, window_bounds = array<i64: 1, 4, 8, 384>}, {pipeline_mode = #tpu.pipeline_mode<synchronous>, transform_indices = @transform_1, window_bounds = array<i64: 3, 384, 128>}, {pipeline_mode = #tpu.pipeline_mode<synchronous>, transform_indices = @transform_2, window_bounds = array<i64: 1, 128>}, {transform_indices = @transform_3, window_bounds = array<i64: 1, 16, 128>}]} {
    %c2_i32 = arith.constant 2 : i32
    %0 = arith.muli %arg1, %c2_i32 : i32
    %c0 = arith.constant 0 : index
    %c0_0 = arith.constant 0 : index
    %1 = vector.load %arg4[%c0, %c0_0] : memref<1x128xf32, #tpu.memory_space<vmem>>, vector<1x128xf32>
    %cst = arith.constant 0.000000e+00 : f32
    %2 = vector.broadcast %cst : f32 to vector<16x128xf32>
    %c0_i32 = arith.constant 0 : i32
    %3 = arith.addi %0, %c0_i32 : i32
    %c0_i32_1 = arith.constant 0 : i32
    %4 = arith.addi %3, %c0_i32_1 : i32
    %c0_2 = arith.constant 0 : index
    %5 = arith.index_cast %4 : i32 to index
    %c0_3 = arith.constant 0 : index
    %c0_4 = arith.constant 0 : index
    %6 = vector.load %arg2[%c0_2, %5, %c0_3, %c0_4] : memref<1x4x8x384xf32, #tpu.memory_space<vmem>>, vector<1x2x8x384xf32>
    %7 = vector.shape_cast %6 : vector<1x2x8x384xf32> to vector<2x8x384xf32>
    %8 = vector.shape_cast %7 : vector<2x8x384xf32> to vector<16x384xf32>
    %c0_5 = arith.constant 0 : index
    %c0_6 = arith.constant 0 : index
    %c0_7 = arith.constant 0 : index
    %9 = vector.load %arg3[%c0_5, %c0_6, %c0_7] : memref<3x384x128xf32, #tpu.memory_space<vmem>>, vector<1x384x128xf32>
    %10 = vector.shape_cast %9 : vector<1x384x128xf32> to vector<384x128xf32>
    %cst_8 = arith.constant dense<0.000000e+00> : vector<16x128xf32>
    %11 = tpu.matmul %8, %10, %cst_8 {dimension_numbers = #tpu.dot_dimension_numbers<[1], [0], [0], [1], [0, 0, 1, 1], [], []>} : vector<16x384xf32>, vector<384x128xf32>, vector<16x128xf32> -> vector<16x128xf32>
    %12 = arith.addf %2, %11 : vector<16x128xf32>
    %c0_i32_9 = arith.constant 0 : i32
    %13 = arith.addi %0, %c0_i32_9 : i32
    %c1_i32 = arith.constant 1 : i32
    %14 = arith.addi %13, %c1_i32 : i32
    %c0_10 = arith.constant 0 : index
    %15 = arith.index_cast %14 : i32 to index
    %c0_11 = arith.constant 0 : index
    %c0_12 = arith.constant 0 : index
    %16 = vector.load %arg2[%c0_10, %15, %c0_11, %c0_12] : memref<1x4x8x384xf32, #tpu.memory_space<vmem>>, vector<1x2x8x384xf32>
    %17 = vector.shape_cast %16 : vector<1x2x8x384xf32> to vector<2x8x384xf32>
    %18 = vector.shape_cast %17 : vector<2x8x384xf32> to vector<16x384xf32>
    %c1 = arith.constant 1 : index
    %c0_13 = arith.constant 0 : index
    %c0_14 = arith.constant 0 : index
    %19 = vector.load %arg3[%c1, %c0_13, %c0_14] : memref<3x384x128xf32, #tpu.memory_space<vmem>>, vector<1x384x128xf32>
    %20 = vector.shape_cast %19 : vector<1x384x128xf32> to vector<384x128xf32>
    %cst_15 = arith.constant dense<0.000000e+00> : vector<16x128xf32>
    %21 = tpu.matmul %18, %20, %cst_15 {dimension_numbers = #tpu.dot_dimension_numbers<[1], [0], [0], [1], [0, 0, 1, 1], [], []>} : vector<16x384xf32>, vector<384x128xf32>, vector<16x128xf32> -> vector<16x128xf32>
    %22 = arith.addf %12, %21 : vector<16x128xf32>
    %c0_i32_16 = arith.constant 0 : i32
    %23 = arith.addi %0, %c0_i32_16 : i32
    %c2_i32_17 = arith.constant 2 : i32
    %24 = arith.addi %23, %c2_i32_17 : i32
    %c0_18 = arith.constant 0 : index
    %25 = arith.index_cast %24 : i32 to index
    %c0_19 = arith.constant 0 : index
    %c0_20 = arith.constant 0 : index
    %26 = vector.load %arg2[%c0_18, %25, %c0_19, %c0_20] : memref<1x4x8x384xf32, #tpu.memory_space<vmem>>, vector<1x2x8x384xf32>
    %27 = vector.shape_cast %26 : vector<1x2x8x384xf32> to vector<2x8x384xf32>
    %28 = vector.shape_cast %27 : vector<2x8x384xf32> to vector<16x384xf32>
    %c2 = arith.constant 2 : index
    %c0_21 = arith.constant 0 : index
    %c0_22 = arith.constant 0 : index
    %29 = vector.load %arg3[%c2, %c0_21, %c0_22] : memref<3x384x128xf32, #tpu.memory_space<vmem>>, vector<1x384x128xf32>
    %30 = vector.shape_cast %29 : vector<1x384x128xf32> to vector<384x128xf32>
    %cst_23 = arith.constant dense<0.000000e+00> : vector<16x128xf32>
    %31 = tpu.matmul %28, %30, %cst_23 {dimension_numbers = #tpu.dot_dimension_numbers<[1], [0], [0], [1], [0, 0, 1, 1], [], []>} : vector<16x384xf32>, vector<384x128xf32>, vector<16x128xf32> -> vector<16x128xf32>
    %32 = arith.addf %22, %31 : vector<16x128xf32>
    %33 = vector.broadcast %1 : vector<1x128xf32> to vector<16x128xf32>
    %34 = arith.addf %32, %33 : vector<16x128xf32>
    %cst_24 = arith.constant 0.000000e+00 : f32
    %35 = vector.broadcast %cst_24 : f32 to vector<16x128xf32>
    %36 = arith.cmpf ogt, %34, %35 : vector<16x128xf32>
    %cst_25 = arith.constant 2.000000e-01 : f32
    %37 = vector.broadcast %cst_25 : f32 to vector<16x128xf32>
    %38 = arith.mulf %37, %34 : vector<16x128xf32>
    %39 = arith.select %36, %34, %38 : vector<16x128xi1>, vector<16x128xf32>
    %c0_26 = arith.constant 0 : index
    %c0_27 = arith.constant 0 : index
    %c0_28 = arith.constant 0 : index
    %40 = vector.load %arg5[%c0_26, %c0_27, %c0_28] : memref<1x16x128xf32, #tpu.memory_space<vmem>>, vector<1x16x128xf32>
    %41 = vector.shape_cast %40 : vector<1x16x128xf32> to vector<16x128xf32>
    %42 = vector.shape_cast %39 : vector<16x128xf32> to vector<1x16x128xf32>
    tpu.vector_store %arg5[%c0_26, %c0_27, %c0_28], %42 {strides = array<i32>} : memref<1x16x128xf32, #tpu.memory_space<vmem>>, vector<1x16x128xf32>,
    return
  }
  func.func @transform_0(%arg0: i32, %arg1: i32) -> (i32, i32, i32, i32) {
    %c0_i32 = arith.constant 0 : i32
    %c0_i32_0 = arith.constant 0 : i32
    %c0_i32_1 = arith.constant 0 : i32
    %c0_i32_2 = arith.constant 0 : i32
    return %arg0, %c0_i32, %c0_i32_0, %c0_i32_1 : i32, i32, i32, i32
  }
  func.func @transform_1(%arg0: i32, %arg1: i32) -> (i32, i32, i32) {
    %c0_i32 = arith.constant 0 : i32
    %c0_i32_0 = arith.constant 0 : i32
    %c0_i32_1 = arith.constant 0 : i32
    %c0_i32_2 = arith.constant 0 : i32
    return %c0_i32, %c0_i32_0, %c0_i32_1 : i32, i32, i32
  }
  func.func @transform_2(%arg0: i32, %arg1: i32) -> (i32, i32) {
    %c0_i32 = arith.constant 0 : i32
    %c0_i32_0 = arith.constant 0 : i32
    %c0_i32_1 = arith.constant 0 : i32
    return %c0_i32, %c0_i32_0 : i32, i32
  }
  func.func @transform_3(%arg0: i32, %arg1: i32) -> (i32, i32, i32) {
    %c0_i32 = arith.constant 0 : i32
    %c0_i32_0 = arith.constant 0 : i32
    return %arg0, %arg1, %c0_i32 : i32, i32, i32
  }
}

</mosaic_0001>

<llo_original>
// kernel: dis_conv_module_forward.4
$region0: #{dis_conv_module_forward.4}
  #allocation0 [shape = 'u32[]', space=smem, size = 0x4, offset = 0x4, fixed_abs, tag = 'smem constant byte address 0x4 - core index']
  #allocation1 [shape = 'u32[72,128]{1,0:T(1,128)}', space=vmem, size = 0x9000, scoped, tag = 'internal scratch']
  %s0 = inlined_call_operand.vmem [shape: f32[2,16,16,144], index: 0, kind: input, shape index: {}]
  %s1 = inlined_call_operand.vmem [shape: f32[1,144,128], index: 1, kind: input, shape index: {}]
  %s2 = inlined_call_operand.vmem [shape: f32[1,128], index: 2, kind: input, shape index: {}]
  %s3 = inlined_call_operand.vmem [shape: f32[2,256,128], index: 3, kind: output, shape index: {}]
  %s4 = sld [smem:[#allocation0]]
  $region45: #{dis_conv_module_forward.4} parent=0
    _
  %s6 = ssub.s32 1, %s4
  %s7 = scalar_select 0, %s6, %s4
  loop: start=0, step=1, limit=4
  $region2: #{dis_conv_module_forward.4} parent=0 // loop_pre_header
    _
  $region3: #{dis_conv_module_forward.4} parent=0 // loop_header
    %s9 = sphi 0, %s13
    %p10 = scmp.ge.s32.totalorder %s9, 4
    %s16 = sphi 0, %s28
    %s17 = sphi 0, %s24
    %s18 = sphi 0, %s16
    %s19 = sphi 0, %s17
    %s20 = sphi 0, %s18
    %s21 = sphi 0, %s19
    %s31 = sphi 0, %s33
    %s34 = sphi 0, %s31
    %s35 = sphi 0, %s34
    %s51 = sphi 0, %s35
    %s55 = sphi 0, %s55
    %s57 = sphi 0, %s55
    %s58 = sphi 0, %s57
    %s72 = sphi 0, %s58
    %s76 = sphi 0, %s76
    %s78 = sphi 0, %s76
    %s79 = sphi 0, %s78
    %s93 = sphi 0, %s79
    %s101 = sphi 0, %s103
    %s104 = sphi 0, %s101
    %s105 = sphi 0, %s104
    %s121 = sphi 0, %s105
  $region4: #{dis_conv_module_forward.4} parent=0 // loop_header_branch
    %12 = sbr.rel (%p10) target = $region8
  $region5: #{dis_conv_module_forward.4} parent=0 // loop_body
    %s14 = ssub.s32 %s9, 1
    %s15 = ssub.s32 %s9, 2
    %s22 = sadd.s32 1, %s17
    %p23 = scmp.ge.s32.totalorder %s22, 1
    %s24 = scalar_select %p23, 0, %s22
    %s25 = sadd.s32 1, %s16
    %s26 = scalar_select %p23, %s25, %s16
    %p27 = scmp.ge.s32.totalorder %s26, 2
    %s28 = scalar_select %p27, 0, %s26
    %s29 = ssub.s32 %s16, %s28
    %p30 = scmp.eq.s32.totalorder %s29, 0
    %s32 = sadd.s32 %s31, 1
    %s33 = scalar_select %p30, %s31, %s32
    %p36 = pneg %p30
    %p37 = scmp.eq.s32.totalorder %s9, 1
    %p38 = por %p36, %p37
    %p39 = scmp.ne.s32.totalorder %s31, %s34
    %p40 = scmp.eq.s32.totalorder %s9, 0
    %p41 = por %p39, %p40
    %p42 = scmp.ne.s32.totalorder %s31, %s34
    %p43 = scmp.eq.s32.totalorder %s14, 1
    %p44 = por %p42, %p43
    %p45 = scmp.ne.s32.totalorder %s34, %s35
    %p46 = scmp.eq.s32.totalorder %s14, 0
    %p47 = por %p45, %p46
    %p48 = scmp.ne.s32.totalorder %s34, %s35
    %p49 = scmp.eq.s32.totalorder %s15, 1
    %p50 = por %p48, %p49
    %p52 = scmp.ne.s32.totalorder %s35, %s51
    %p53 = scmp.eq.s32.totalorder %s15, 0
    %p54 = por %p52, %p53
    %s56 = sadd.s32 %s55, 1
    %p59 = scmp.eq.s32.totalorder %s9, 1
    %p60 = scmp.ne.s32.totalorder %s55, %s57
    %p61 = scmp.eq.s32.totalorder %s9, 0
    %p62 = por %p60, %p61
    %p63 = scmp.ne.s32.totalorder %s55, %s57
    %p64 = scmp.eq.s32.totalorder %s14, 1
    %p65 = por %p63, %p64
    %p66 = scmp.ne.s32.totalorder %s57, %s58
    %p67 = scmp.eq.s32.totalorder %s14, 0
    %p68 = por %p66, %p67
    %p69 = scmp.ne.s32.totalorder %s57, %s58
    %p70 = scmp.eq.s32.totalorder %s15, 1
    %p71 = por %p69, %p70
    %p73 = scmp.ne.s32.totalorder %s58, %s72
    %p74 = scmp.eq.s32.totalorder %s15, 0
    %p75 = por %p73, %p74
    %s77 = sadd.s32 %s76, 1
    %p80 = scmp.eq.s32.totalorder %s9, 1
    %p81 = scmp.ne.s32.totalorder %s76, %s78
    %p82 = scmp.eq.s32.totalorder %s9, 0
    %p83 = por %p81, %p82
    %p84 = scmp.ne.s32.totalorder %s76, %s78
    %p85 = scmp.eq.s32.totalorder %s14, 1
    %p86 = por %p84, %p85
    %p87 = scmp.ne.s32.totalorder %s78, %s79
    %p88 = scmp.eq.s32.totalorder %s14, 0
    %p89 = por %p87, %p88
    %p90 = scmp.ne.s32.totalorder %s78, %s79
    %p91 = scmp.eq.s32.totalorder %s15, 1
    %p92 = por %p90, %p91
    %p94 = scmp.ne.s32.totalorder %s79, %s93
    %p95 = scmp.eq.s32.totalorder %s15, 0
    %p96 = por %p94, %p95
    %s97 = ssub.s32 %s16, %s28
    %s98 = ssub.s32 %s17, %s24
    %s99 = sor.u32 %s97, %s98
    %p100 = scmp.eq.s32.totalorder %s99, 0
    %s102 = sadd.s32 %s101, 1
    %s103 = scalar_select %p100, %s101, %s102
    %p106 = pneg %p100
    %p107 = scmp.eq.s32.totalorder %s9, 1
    %p108 = por %p106, %p107
    %p109 = scmp.ne.s32.totalorder %s101, %s104
    %p110 = scmp.eq.s32.totalorder %s9, 0
    %p111 = por %p109, %p110
    %p112 = scmp.ne.s32.totalorder %s101, %s104
    %p113 = scmp.eq.s32.totalorder %s14, 1
    %p114 = por %p112, %p113
    %p115 = scmp.ne.s32.totalorder %s104, %s105
    %p116 = scmp.eq.s32.totalorder %s14, 0
    %p117 = por %p115, %p116
    %p118 = scmp.ne.s32.totalorder %s104, %s105
    %p119 = scmp.eq.s32.totalorder %s15, 1
    %p120 = por %p118, %p119
    %p122 = scmp.ne.s32.totalorder %s105, %s121
    %p123 = scmp.eq.s32.totalorder %s15, 0
    %p124 = por %p122, %p123
    %p125 = scmp.le.s32.totalorder 1, %s9
    %p126 = scmp.lt.s32.totalorder %s9, 3
    %p127 = pnand %p125, %p126
    %p128 = pneg %p127
    // Predicated region
    $region9: #{dis_conv_module_forward.4} parent=5 // pred_check
      _
    $region10: #{dis_conv_module_forward.4} parent=5 // pred_check_branch
      %130 = sbr.rel (%p127) target = $region12
    $region11: #{dis_conv_module_forward.4} parent=5 // pred_region
      %s131 = ssub.s32 %s9, 1
      // Predicated region
      $region13: #{dis_conv_module_forward.4} parent=11 // pred_check
        %p132 = pneg %p68
      $region14: #{dis_conv_module_forward.4} parent=11 // pred_check_branch
        %134 = sbr.rel (%p132) target = $region16
      $region15: #{dis_conv_module_forward.4} parent=11 // pred_region
        _
      $region16: #{dis_conv_module_forward.4} parent=11 // pred_fallthru
        _
      // Predicated region
      $region17: #{dis_conv_module_forward.4} parent=11 // pred_check
        %p135 = pneg %p89
      $region18: #{dis_conv_module_forward.4} parent=11 // pred_check_branch
        %137 = sbr.rel (%p135) target = $region20
      $region19: #{dis_conv_module_forward.4} parent=11 // pred_region
        _
      $region20: #{dis_conv_module_forward.4} parent=11 // pred_fallthru
        _
    $region12: #{dis_conv_module_forward.4} parent=5 // pred_fallthru
      _
    %p138 = scmp.lt.s32.totalorder %s9, 2
    // Predicated region
    $region21: #{dis_conv_module_forward.4} parent=5 // pred_check
      %p139 = pneg %p138
    $region22: #{dis_conv_module_forward.4} parent=5 // pred_check_branch
      %141 = sbr.rel (%p139) target = $region24
    $region23: #{dis_conv_module_forward.4} parent=5 // pred_region
      // Predicated region
      $region25: #{dis_conv_module_forward.4} parent=23 // pred_check
        %p142 = pneg %p41
      $region26: #{dis_conv_module_forward.4} parent=23 // pred_check_branch
        %144 = sbr.rel (%p142) target = $region28
      $region27: #{dis_conv_module_forward.4} parent=23 // pred_region
        %p145 = scmp.lt.s32.totalorder %s16, 1
        %s146 = scalar_select %p145, %s16, 1
        %s147 = smul.addr %s146, 64
        %s148 = smul.addr %s147, 8
        %s149 = scalar_lea.vmem %s0, %s148
      $region28: #{dis_conv_module_forward.4} parent=23 // pred_fallthru
        _
    $region24: #{dis_conv_module_forward.4} parent=5 // pred_fallthru
      _
    %p150 = scmp.le.s32.totalorder 1, %s9
    %p151 = scmp.lt.s32.totalorder %s9, 3
    %p152 = pnand %p150, %p151
    %p153 = pneg %p152
    // Predicated region
    $region29: #{dis_conv_module_forward.4} parent=5 // pred_check
      _
    $region30: #{dis_conv_module_forward.4} parent=5 // pred_check_branch
      %155 = sbr.rel (%p152) target = $region32
    $region31: #{dis_conv_module_forward.4} parent=5 // pred_region
      %s156 = ssub.s32 %s9, 1
      %p157 = scmp.lt.s32.totalorder %s18, 1
      %s158 = scalar_select %p157, %s18, 1
      %s159 = smul.addr %s158, 64
      %s160 = smul.addr %s159, 8
      %s161 = scalar_lea.vmem %s0, %s160
      %p162 = pneg %p47
      %p163 = pneg %p44
      %p164 = pneg %p68
      %p165 = pneg %p65
      %p166 = pneg %p89
      %p167 = pneg %p86
      %p168 = pneg %p117
      %p169 = pneg %p114
      %s170 = smul.u32 32, %s19
      %p171 = scmp.lt.s32.totalorder %s18, 1
      %s172 = scalar_select %p171, %s18, 1
      %p173 = scmp.lt.s32.totalorder %s170, 31
      %s174 = scalar_select %p173, %s170, 31
      %s175 = smul.addr %s172, 32
      %s176 = sadd.s32 %s174, %s175
      %s177 = smul.addr %s176, 8
      %s178 = scalar_lea.vmem %s3, %s177
      %p179 = scmp.lt.s32.totalorder %s18, 1
      %s180 = scalar_select %p179, %s18, 1
      %s181 = smul.addr %s180, 64
      %s182 = smul.addr %s181, 8
      %s183 = scalar_lea.vmem %s0, %s182
      %s184 = smul.u32 32, %s19
      %p185 = scmp.lt.s32.totalorder %s18, 1
      %s186 = scalar_select %p185, %s18, 1
      %p187 = scmp.lt.s32.totalorder %s184, 31
      %s188 = scalar_select %p187, %s184, 31
      %s189 = smul.addr %s186, 32
      %s190 = sadd.s32 %s188, %s189
      %s191 = smul.addr %s190, 8
      %s192 = scalar_lea.vmem %s3, %s191
      %s193 = smul.u32 32, %s19
      %s194 = smul.u32 %s19, 16
      %v195 = vld [vmem:[%s2] sm:$0x1]
      %s196 = smul.u32 %s194, 4
      %s197 = smul.addr %s196, 8
      %s198 = scalar_lea.vmem %s183, %s197
      %v199 = vld [vmem:[%s198] sm:$0xff]
      %v200 = vld [vmem:[%s198 + $0x8] sm:$0xff]
      %v201 = vld [vmem:[%s198 + $0x10] sm:$0xff]
      %v202 = vld [vmem:[%s198 + $0x18] sm:$0xff]
      %v203 = vld [vmem:[%s198 + $0x20] sm:$0xff]
      %v204 = vld [vmem:[%s198 + $0x28] sm:$0xff]
      %v205 = vld [vmem:[%s198 + $0x30] sm:$0xff]
      %v206 = vld [vmem:[%s198 + $0x38] sm:$0xff]
      %v207 = vld [vmem:[%s198 + $0x40] sm:$0xff]
      %v208 = vld [vmem:[%s198 + $0x48] sm:$0xff]
      %v209 = vld [vmem:[%s198 + $0x50] sm:$0xff]
      %v210 = vld [vmem:[%s198 + $0x58] sm:$0xff]
      %v211 = vld [vmem:[%s198 + $0x60] sm:$0xff]
      %v212 = vld [vmem:[%s198 + $0x68] sm:$0xff]
      %v213 = vld [vmem:[%s198 + $0x70] sm:$0xff]
      %v214 = vld [vmem:[%s198 + $0x78] sm:$0xff]
      %v215 = vld [vmem:[%s198 + $0x80] sm:$0xff]
      %v216 = vld [vmem:[%s198 + $0x88] sm:$0xff]
      %v217 = vld [vmem:[%s198 + $0x90] sm:$0xff]
      %v218 = vld [vmem:[%s198 + $0x98] sm:$0xff]
      %v219 = vld [vmem:[%s198 + $0xa0] sm:$0xff]
      %v220 = vld [vmem:[%s198 + $0xa8] sm:$0xff]
      %v221 = vld [vmem:[%s198 + $0xb0] sm:$0xff]
      %v222 = vld [vmem:[%s198 + $0xb8] sm:$0xff]
      %v223 = vld [vmem:[%s198 + $0xc0] sm:$0xff]
      %v224 = vld [vmem:[%s198 + $0xc8] sm:$0xff]
      %v225 = vld [vmem:[%s198 + $0xd0] sm:$0xff]
      %v226 = vld [vmem:[%s198 + $0xd8] sm:$0xff]
      %v227 = vld [vmem:[%s198 + $0xe0] sm:$0xff]
      %v228 = vld [vmem:[%s198 + $0xe8] sm:$0xff]
      %v229 = vld [vmem:[%s198 + $0xf0] sm:$0xff]
      %v230 = vld [vmem:[%s198 + $0xf8] sm:$0xff]
      %v231 = vld [vmem:[%s198 + $0x100] sm:$0xff]
      %v232 = vld [vmem:[%s198 + $0x108] sm:$0xff]
      %v233 = vld [vmem:[%s198 + $0x110] sm:$0xff]
      %v234 = vld [vmem:[%s198 + $0x118] sm:$0xff]
      %v235 = vld [vmem:[%s198 + $0x120] sm:$0xff]
      %v236 = vld [vmem:[%s198 + $0x128] sm:$0xff]
      %v237 = vld [vmem:[%s198 + $0x130] sm:$0xff]
      %v238 = vld [vmem:[%s198 + $0x138] sm:$0xff]
      %v239 = vld [vmem:[%s198 + $0x140] sm:$0xff]
      %v240 = vld [vmem:[%s198 + $0x148] sm:$0xff]
      %v241 = vld [vmem:[%s198 + $0x150] sm:$0xff]
      %v242 = vld [vmem:[%s198 + $0x158] sm:$0xff]
      %v243 = vld [vmem:[%s198 + $0x160] sm:$0xff]
      %v244 = vld [vmem:[%s198 + $0x168] sm:$0xff]
      %v245 = vld [vmem:[%s198 + $0x170] sm:$0xff]
      %v246 = vld [vmem:[%s198 + $0x178] sm:$0xff]
      %v247 = vld [vmem:[%s198 + $0x180] sm:$0xff]
      %v248 = vld [vmem:[%s198 + $0x188] sm:$0xff]
      %v249 = vld [vmem:[%s198 + $0x190] sm:$0xff]
      %v250 = vld [vmem:[%s198 + $0x198] sm:$0xff]
      %v251 = vld [vmem:[%s198 + $0x1a0] sm:$0xff]
      %v252 = vld [vmem:[%s198 + $0x1a8] sm:$0xff]
      %v253 = vld [vmem:[%s198 + $0x1b0] sm:$0xff]
      %v254 = vld [vmem:[%s198 + $0x1b8] sm:$0xff]
      %v255 = vld [vmem:[%s198 + $0x1c0] sm:$0xff]
      %v256 = vld [vmem:[%s198 + $0x1c8] sm:$0xff]
      %v257 = vld [vmem:[%s198 + $0x1d0] sm:$0xff]
      %v258 = vld [vmem:[%s198 + $0x1d8] sm:$0xff]
      %v259 = vld [vmem:[%s198 + $0x1e0] sm:$0xff]
      %v260 = vld [vmem:[%s198 + $0x1e8] sm:$0xff]
      %v261 = vld [vmem:[%s198 + $0x1f0] sm:$0xff]
      %v262 = vld [vmem:[%s198 + $0x1f8] sm:$0xff]
      %v263 = vld [vmem:[%s1] sm:$0xff]
      %v264 = vld [vmem:[%s1 + $0x8] sm:$0xff]
      %v265 = vld [vmem:[%s1 + $0x10] sm:$0xff]
      %v266 = vld [vmem:[%s1 + $0x18] sm:$0xff]
      %v267 = vld [vmem:[%s1 + $0x20] sm:$0xff]
      %v268 = vld [vmem:[%s1 + $0x28] sm:$0xff]
      %v269 = vld [vmem:[%s1 + $0x30] sm:$0xff]
      %v270 = vld [vmem:[%s1 + $0x38] sm:$0xff]
      %v271 = vld [vmem:[%s1 + $0x40] sm:$0xff]
      %v272 = vld [vmem:[%s1 + $0x48] sm:$0xff]
      %v273 = vld [vmem:[%s1 + $0x50] sm:$0xff]
      %v274 = vld [vmem:[%s1 + $0x58] sm:$0xff]
      %v275 = vld [vmem:[%s1 + $0x60] sm:$0xff]
      %v276 = vld [vmem:[%s1 + $0x68] sm:$0xff]
      %v277 = vld [vmem:[%s1 + $0x70] sm:$0xff]
      %v278 = vld [vmem:[%s1 + $0x78] sm:$0xff]
      %v279 = vld [vmem:[%s1 + $0x80] sm:$0xff]
      %v280 = vld [vmem:[%s1 + $0x88] sm:$0xff]
      %v282 = vperm.slane %v195, 0
      %vm284 = vcmask 130048
      %v286 = vsel %vm284, %v200, 0
      %v289 = vsel %vm284, %v202, 0
      %v292 = vsel %vm284, %v204, 0
      %v295 = vsel %vm284, %v206, 0
      %v298 = vsel %vm284, %v208, 0
      %v301 = vsel %vm284, %v210, 0
      %v304 = vsel %vm284, %v212, 0
      %v307 = vsel %vm284, %v214, 0
      %v310 = vsel %vm284, %v216, 0
      %v313 = vsel %vm284, %v218, 0
      %v316 = vsel %vm284, %v220, 0
      %v319 = vsel %vm284, %v222, 0
      %v322 = vsel %vm284, %v224, 0
      %v325 = vsel %vm284, %v226, 0
      %v328 = vsel %vm284, %v228, 0
      %v331 = vsel %vm284, %v230, 0
      %v334 = vsel %vm284, %v232, 0
      %v337 = vsel %vm284, %v234, 0
      %v340 = vsel %vm284, %v236, 0
      %v343 = vsel %vm284, %v238, 0
      %v346 = vsel %vm284, %v240, 0
      %v349 = vsel %vm284, %v242, 0
      %v352 = vsel %vm284, %v244, 0
      %v355 = vsel %vm284, %v246, 0
      %v358 = vsel %vm284, %v248, 0
      %v361 = vsel %vm284, %v250, 0
      %v364 = vsel %vm284, %v252, 0
      %v367 = vsel %vm284, %v254, 0
      %v370 = vsel %vm284, %v256, 0
      %v373 = vsel %vm284, %v258, 0
      %v376 = vsel %vm284, %v260, 0
      %v379 = vsel %vm284, %v262, 0
      %381 = vmatpush.msra.mxu0 %v278
      %382 = vmatpush.msra.mxu0 %v277
      %383 = vmatpush.msra.mxu0 %v276
      %384 = vmatpush.msra.mxu0 %v275
      %385 = vmatpush.msra.mxu0 %v274
      %386 = vmatpush.msra.mxu0 %v273
      %387 = vmatpush.msra.mxu0 %v272
      %388 = vmatpush.msra.mxu0 %v271
      %389 = vmatpush.msra.mxu0 %v270
      %390 = vmatpush.msra.mxu0 %v269
      %391 = vmatpush.msra.mxu0 %v268
      %392 = vmatpush.msra.mxu0 %v267
      %393 = vmatpush.msra.mxu0 %v266
      %394 = vmatpush.msra.mxu0 %v265
      %395 = vmatpush.msra.mxu0 %v264
      %396 = vmatpush.msra.mxu0 %v263
      %397 = vmatmul.f32.gmra.mxu0 %v199
      %v398 = vpop.f32.mrf.mxu0
      %v399 = vadd.f32 %v282, %v398
      %400 = vmatmul.f32.gmra.mxu0 %v201
      %v401 = vpop.f32.mrf.mxu0
      %v402 = vadd.f32 %v282, %v401
      %403 = vmatmul.f32.gmra.mxu0 %v203
      %v404 = vpop.f32.mrf.mxu0
      %v405 = vadd.f32 %v282, %v404
      %406 = vmatmul.f32.gmra.mxu0 %v205
      %v407 = vpop.f32.mrf.mxu0
      %v408 = vadd.f32 %v282, %v407
      %409 = vmatmul.f32.gmra.mxu0 %v207
      %v410 = vpop.f32.mrf.mxu0
      %v411 = vadd.f32 %v282, %v410
      %412 = vmatmul.f32.gmra.mxu0 %v209
      %v413 = vpop.f32.mrf.mxu0
      %v414 = vadd.f32 %v282, %v413
      %415 = vmatmul.f32.gmra.mxu0 %v211
      %v416 = vpop.f32.mrf.mxu0
      %v417 = vadd.f32 %v282, %v416
      %418 = vmatmul.f32.gmra.mxu0 %v213
      %v419 = vpop.f32.mrf.mxu0
      %v420 = vadd.f32 %v282, %v419
      %421 = vmatmul.f32.gmra.mxu0 %v215
      %v422 = vpop.f32.mrf.mxu0
      %v423 = vadd.f32 %v282, %v422
      %424 = vmatmul.f32.gmra.mxu0 %v217
      %v425 = vpop.f32.mrf.mxu0
      %v426 = vadd.f32 %v282, %v425
      %427 = vmatmul.f32.gmra.mxu0 %v219
      %v428 = vpop.f32.mrf.mxu0
      %v429 = vadd.f32 %v282, %v428
      %430 = vmatmul.f32.gmra.mxu0 %v221
      %v431 = vpop.f32.mrf.mxu0
      %v432 = vadd.f32 %v282, %v431
      %433 = vmatmul.f32.gmra.mxu0 %v223
      %v434 = vpop.f32.mrf.mxu0
      %v435 = vadd.f32 %v282, %v434
      %436 = vmatmul.f32.gmra.mxu0 %v225
      %v437 = vpop.f32.mrf.mxu0
      %v438 = vadd.f32 %v282, %v437
      %439 = vmatmul.f32.gmra.mxu0 %v227
      %v440 = vpop.f32.mrf.mxu0
      %v441 = vadd.f32 %v282, %v440
      %442 = vmatmul.f32.gmra.mxu0 %v229
      %v443 = vpop.f32.mrf.mxu0
      %v444 = vadd.f32 %v282, %v443
      %445 = vmatmul.f32.gmra.mxu0 %v231
      %v446 = vpop.f32.mrf.mxu0
      %v447 = vadd.f32 %v282, %v446
      %448 = vmatmul.f32.gmra.mxu0 %v233
      %v449 = vpop.f32.mrf.mxu0
      %v450 = vadd.f32 %v282, %v449
      %451 = vmatmul.f32.gmra.mxu0 %v235
      %v452 = vpop.f32.mrf.mxu0
      %v453 = vadd.f32 %v282, %v452
      %454 = vmatmul.f32.gmra.mxu0 %v237
      %v455 = vpop.f32.mrf.mxu0
      %v456 = vadd.f32 %v282, %v455
      %457 = vmatmul.f32.gmra.mxu0 %v239
      %v458 = vpop.f32.mrf.mxu0
      %v459 = vadd.f32 %v282, %v458
      %460 = vmatmul.f32.gmra.mxu0 %v241
      %v461 = vpop.f32.mrf.mxu0
      %v462 = vadd.f32 %v282, %v461
      %463 = vmatmul.f32.gmra.mxu0 %v243
      %v464 = vpop.f32.mrf.mxu0
      %v465 = vadd.f32 %v282, %v464
      %466 = vmatmul.f32.gmra.mxu0 %v245
      %v467 = vpop.f32.mrf.mxu0
      %v468 = vadd.f32 %v282, %v467
      %469 = vmatmul.f32.gmra.mxu0 %v247
      %v470 = vpop.f32.mrf.mxu0
      %v471 = vadd.f32 %v282, %v470
      %472 = vmatmul.f32.gmra.mxu0 %v249
      %v473 = vpop.f32.mrf.mxu0
      %v474 = vadd.f32 %v282, %v473
      %475 = vmatmul.f32.gmra.mxu0 %v251
      %v476 = vpop.f32.mrf.mxu0
      %v477 = vadd.f32 %v282, %v476
      %478 = vmatmul.f32.gmra.mxu0 %v253
      %v479 = vpop.f32.mrf.mxu0
      %v480 = vadd.f32 %v282, %v479
      %481 = vmatmul.f32.gmra.mxu0 %v255
      %v482 = vpop.f32.mrf.mxu0
      %v483 = vadd.f32 %v282, %v482
      %484 = vmatmul.f32.gmra.mxu0 %v257
      %v485 = vpop.f32.mrf.mxu0
      %v486 = vadd.f32 %v282, %v485
      %487 = vmatmul.f32.gmra.mxu0 %v259
      %v488 = vpop.f32.mrf.mxu0
      %v489 = vadd.f32 %v282, %v488
      %490 = vmatmul.f32.gmra.mxu0 %v261
      %v491 = vpop.f32.mrf.mxu0
      %v492 = vadd.f32 %v282, %v491
      %493 = vdwg.mxu0
      %494 = vmatpush.msra.mxu0 0.0
      %495 = vmatpush.msra.mxu0 0.0
      %496 = vmatpush.msra.mxu0 0.0
      %497 = vmatpush.msra.mxu0 0.0
      %498 = vmatpush.msra.mxu0 0.0
      %499 = vmatpush.msra.mxu0 0.0
      %500 = vmatpush.msra.mxu0 0.0
      %501 = vmatpush.msra.mxu0 0.0
      %502 = vmatpush.msra.mxu0 0.0
      %503 = vmatpush.msra.mxu0 0.0
      %504 = vmatpush.msra.mxu0 0.0
      %505 = vmatpush.msra.mxu0 0.0
      %506 = vmatpush.msra.mxu0 0.0
      %507 = vmatpush.msra.mxu0 0.0
      %508 = vmatpush.msra.mxu0 %v280
      %509 = vmatpush.msra.mxu0 %v279
      %510 = vmatmul.f32.gmra.mxu0 %v286
      %v511 = vpop.f32.mrf.mxu0
      %v512 = vadd.f32 %v399, %v511
      %513 = vmatmul.f32.gmra.mxu0 %v289
      %v514 = vpop.f32.mrf.mxu0
      %v515 = vadd.f32 %v402, %v514
      %516 = vmatmul.f32.gmra.mxu0 %v292
      %v517 = vpop.f32.mrf.mxu0
      %v518 = vadd.f32 %v405, %v517
      %519 = vmatmul.f32.gmra.mxu0 %v295
      %v520 = vpop.f32.mrf.mxu0
      %v521 = vadd.f32 %v408, %v520
      %522 = vmatmul.f32.gmra.mxu0 %v298
      %v523 = vpop.f32.mrf.mxu0
      %v524 = vadd.f32 %v411, %v523
      %525 = vmatmul.f32.gmra.mxu0 %v301
      %v526 = vpop.f32.mrf.mxu0
      %v527 = vadd.f32 %v414, %v526
      %528 = vmatmul.f32.gmra.mxu0 %v304
      %v529 = vpop.f32.mrf.mxu0
      %v530 = vadd.f32 %v417, %v529
      %531 = vmatmul.f32.gmra.mxu0 %v307
      %v532 = vpop.f32.mrf.mxu0
      %v533 = vadd.f32 %v420, %v532
      %534 = vmatmul.f32.gmra.mxu0 %v310
      %v535 = vpop.f32.mrf.mxu0
      %v536 = vadd.f32 %v423, %v535
      %537 = vmatmul.f32.gmra.mxu0 %v313
      %v538 = vpop.f32.mrf.mxu0
      %v539 = vadd.f32 %v426, %v538
      %540 = vmatmul.f32.gmra.mxu0 %v316
      %v541 = vpop.f32.mrf.mxu0
      %v542 = vadd.f32 %v429, %v541
      %543 = vmatmul.f32.gmra.mxu0 %v319
      %v544 = vpop.f32.mrf.mxu0
      %v545 = vadd.f32 %v432, %v544
      %546 = vmatmul.f32.gmra.mxu0 %v322
      %v547 = vpop.f32.mrf.mxu0
      %v548 = vadd.f32 %v435, %v547
      %549 = vmatmul.f32.gmra.mxu0 %v325
      %v550 = vpop.f32.mrf.mxu0
      %v551 = vadd.f32 %v438, %v550
      %552 = vmatmul.f32.gmra.mxu0 %v328
      %v553 = vpop.f32.mrf.mxu0
      %v554 = vadd.f32 %v441, %v553
      %555 = vmatmul.f32.gmra.mxu0 %v331
      %v556 = vpop.f32.mrf.mxu0
      %v557 = vadd.f32 %v444, %v556
      %558 = vmatmul.f32.gmra.mxu0 %v334
      %v559 = vpop.f32.mrf.mxu0
      %v560 = vadd.f32 %v447, %v559
      %561 = vmatmul.f32.gmra.mxu0 %v337
      %v562 = vpop.f32.mrf.mxu0
      %v563 = vadd.f32 %v450, %v562
      %564 = vmatmul.f32.gmra.mxu0 %v340
      %v565 = vpop.f32.mrf.mxu0
      %v566 = vadd.f32 %v453, %v565
      %567 = vmatmul.f32.gmra.mxu0 %v343
      %v568 = vpop.f32.mrf.mxu0
      %v569 = vadd.f32 %v456, %v568
      %570 = vmatmul.f32.gmra.mxu0 %v346
      %v571 = vpop.f32.mrf.mxu0
      %v572 = vadd.f32 %v459, %v571
      %573 = vmatmul.f32.gmra.mxu0 %v349
      %v574 = vpop.f32.mrf.mxu0
      %v575 = vadd.f32 %v462, %v574
      %576 = vmatmul.f32.gmra.mxu0 %v352
      %v577 = vpop.f32.mrf.mxu0
      %v578 = vadd.f32 %v465, %v577
      %579 = vmatmul.f32.gmra.mxu0 %v355
      %v580 = vpop.f32.mrf.mxu0
      %v581 = vadd.f32 %v468, %v580
      %582 = vmatmul.f32.gmra.mxu0 %v358
      %v583 = vpop.f32.mrf.mxu0
      %v584 = vadd.f32 %v471, %v583
      %585 = vmatmul.f32.gmra.mxu0 %v361
      %v586 = vpop.f32.mrf.mxu0
      %v587 = vadd.f32 %v474, %v586
      %588 = vmatmul.f32.gmra.mxu0 %v364
      %v589 = vpop.f32.mrf.mxu0
      %v590 = vadd.f32 %v477, %v589
      %591 = vmatmul.f32.gmra.mxu0 %v367
      %v592 = vpop.f32.mrf.mxu0
      %v593 = vadd.f32 %v480, %v592
      %594 = vmatmul.f32.gmra.mxu0 %v370
      %v595 = vpop.f32.mrf.mxu0
      %v596 = vadd.f32 %v483, %v595
      %597 = vmatmul.f32.gmra.mxu0 %v373
      %v598 = vpop.f32.mrf.mxu0
      %v599 = vadd.f32 %v486, %v598
      %600 = vmatmul.f32.gmra.mxu0 %v376
      %v601 = vpop.f32.mrf.mxu0
      %v602 = vadd.f32 %v489, %v601
      %603 = vmatmul.f32.gmra.mxu0 %v379
      %v604 = vpop.f32.mrf.mxu0
      %v605 = vadd.f32 %v492, %v604
      %606 = vdwg.mxu0
      %vm607 = vcmp.gt.f32.partialorder %v512, 0.0
      %vm608 = vcmp.gt.f32.partialorder %v515, 0.0
      %vm609 = vcmp.gt.f32.partialorder %v518, 0.0
      %vm610 = vcmp.gt.f32.partialorder %v521, 0.0
      %vm611 = vcmp.gt.f32.partialorder %v524, 0.0
      %vm612 = vcmp.gt.f32.partialorder %v527, 0.0
      %vm613 = vcmp.gt.f32.partialorder %v530, 0.0
      %vm614 = vcmp.gt.f32.partialorder %v533, 0.0
      %vm615 = vcmp.gt.f32.partialorder %v536, 0.0
      %vm616 = vcmp.gt.f32.partialorder %v539, 0.0
      %vm617 = vcmp.gt.f32.partialorder %v542, 0.0
      %vm618 = vcmp.gt.f32.partialorder %v545, 0.0
      %vm619 = vcmp.gt.f32.partialorder %v548, 0.0
      %vm620 = vcmp.gt.f32.partialorder %v551, 0.0
      %vm621 = vcmp.gt.f32.partialorder %v554, 0.0
      %vm622 = vcmp.gt.f32.partialorder %v557, 0.0
      %vm623 = vcmp.gt.f32.partialorder %v560, 0.0
      %vm624 = vcmp.gt.f32.partialorder %v563, 0.0
      %vm625 = vcmp.gt.f32.partialorder %v566, 0.0
      %vm626 = vcmp.gt.f32.partialorder %v569, 0.0
      %vm627 = vcmp.gt.f32.partialorder %v572, 0.0
      %vm628 = vcmp.gt.f32.partialorder %v575, 0.0
      %vm629 = vcmp.gt.f32.partialorder %v578, 0.0
      %vm630 = vcmp.gt.f32.partialorder %v581, 0.0
      %vm631 = vcmp.gt.f32.partialorder %v584, 0.0
      %vm632 = vcmp.gt.f32.partialorder %v587, 0.0
      %vm633 = vcmp.gt.f32.partialorder %v590, 0.0
      %vm634 = vcmp.gt.f32.partialorder %v593, 0.0
      %vm635 = vcmp.gt.f32.partialorder %v596, 0.0
      %vm636 = vcmp.gt.f32.partialorder %v599, 0.0
      %vm637 = vcmp.gt.f32.partialorder %v602, 0.0
      %vm638 = vcmp.gt.f32.partialorder %v605, 0.0
      %v639 = vmul.f32 %v512, 0.2
      %v640 = vmul.f32 %v515, 0.2
      %v641 = vmul.f32 %v518, 0.2
      %v642 = vmul.f32 %v521, 0.2
      %v643 = vmul.f32 %v524, 0.2
      %v644 = vmul.f32 %v527, 0.2
      %v645 = vmul.f32 %v530, 0.2
      %v646 = vmul.f32 %v533, 0.2
      %v647 = vmul.f32 %v536, 0.2
      %v648 = vmul.f32 %v539, 0.2
      %v649 = vmul.f32 %v542, 0.2
      %v650 = vmul.f32 %v545, 0.2
      %v651 = vmul.f32 %v548, 0.2
      %v652 = vmul.f32 %v551, 0.2
      %v653 = vmul.f32 %v554, 0.2
      %v654 = vmul.f32 %v557, 0.2
      %v655 = vmul.f32 %v560, 0.2
      %v656 = vmul.f32 %v563, 0.2
      %v657 = vmul.f32 %v566, 0.2
      %v658 = vmul.f32 %v569, 0.2
      %v659 = vmul.f32 %v572, 0.2
      %v660 = vmul.f32 %v575, 0.2
      %v661 = vmul.f32 %v578, 0.2
      %v662 = vmul.f32 %v581, 0.2
      %v663 = vmul.f32 %v584, 0.2
      %v664 = vmul.f32 %v587, 0.2
      %v665 = vmul.f32 %v590, 0.2
      %v666 = vmul.f32 %v593, 0.2
      %v667 = vmul.f32 %v596, 0.2
      %v668 = vmul.f32 %v599, 0.2
      %v669 = vmul.f32 %v602, 0.2
      %v670 = vmul.f32 %v605, 0.2
      %v671 = vsel %vm607, %v512, %v639
      %v672 = vsel %vm608, %v515, %v640
      %v673 = vsel %vm609, %v518, %v641
      %v674 = vsel %vm610, %v521, %v642
      %v675 = vsel %vm611, %v524, %v643
      %v676 = vsel %vm612, %v527, %v644
      %v677 = vsel %vm613, %v530, %v645
      %v678 = vsel %vm614, %v533, %v646
      %v679 = vsel %vm615, %v536, %v647
      %v680 = vsel %vm616, %v539, %v648
      %v681 = vsel %vm617, %v542, %v649
      %v682 = vsel %vm618, %v545, %v650
      %v683 = vsel %vm619, %v548, %v651
      %v684 = vsel %vm620, %v551, %v652
      %v685 = vsel %vm621, %v554, %v653
      %v686 = vsel %vm622, %v557, %v654
      %v687 = vsel %vm623, %v560, %v655
      %v688 = vsel %vm624, %v563, %v656
      %v689 = vsel %vm625, %v566, %v657
      %v690 = vsel %vm626, %v569, %v658
      %v691 = vsel %vm627, %v572, %v659
      %v692 = vsel %vm628, %v575, %v660
      %v693 = vsel %vm629, %v578, %v661
      %v694 = vsel %vm630, %v581, %v662
      %v695 = vsel %vm631, %v584, %v663
      %v696 = vsel %vm632, %v587, %v664
      %v697 = vsel %vm633, %v590, %v665
      %v698 = vsel %vm634, %v593, %v666
      %v699 = vsel %vm635, %v596, %v667
      %v700 = vsel %vm636, %v599, %v668
      %v701 = vsel %vm637, %v602, %v669
      %v702 = vsel %vm638, %v605, %v670
      %703 = vst [vmem:[%s192] sm:$0xff] %v671
      %704 = vst [vmem:[%s192 + $0x8] sm:$0xff] %v672
      %705 = vst [vmem:[%s192 + $0x10] sm:$0xff] %v673
      %706 = vst [vmem:[%s192 + $0x18] sm:$0xff] %v674
      %707 = vst [vmem:[%s192 + $0x20] sm:$0xff] %v675
      %708 = vst [vmem:[%s192 + $0x28] sm:$0xff] %v676
      %709 = vst [vmem:[%s192 + $0x30] sm:$0xff] %v677
      %710 = vst [vmem:[%s192 + $0x38] sm:$0xff] %v678
      %711 = vst [vmem:[%s192 + $0x40] sm:$0xff] %v679
      %712 = vst [vmem:[%s192 + $0x48] sm:$0xff] %v680
      %713 = vst [vmem:[%s192 + $0x50] sm:$0xff] %v681
      %714 = vst [vmem:[%s192 + $0x58] sm:$0xff] %v682
      %715 = vst [vmem:[%s192 + $0x60] sm:$0xff] %v683
      %716 = vst [vmem:[%s192 + $0x68] sm:$0xff] %v684
      %717 = vst [vmem:[%s192 + $0x70] sm:$0xff] %v685
      %718 = vst [vmem:[%s192 + $0x78] sm:$0xff] %v686
      %719 = vst [vmem:[%s192 + $0x80] sm:$0xff] %v687
      %720 = vst [vmem:[%s192 + $0x88] sm:$0xff] %v688
      %721 = vst [vmem:[%s192 + $0x90] sm:$0xff] %v689
      %722 = vst [vmem:[%s192 + $0x98] sm:$0xff] %v690
      %723 = vst [vmem:[%s192 + $0xa0] sm:$0xff] %v691
      %724 = vst [vmem:[%s192 + $0xa8] sm:$0xff] %v692
      %725 = vst [vmem:[%s192 + $0xb0] sm:$0xff] %v693
      %726 = vst [vmem:[%s192 + $0xb8] sm:$0xff] %v694
      %727 = vst [vmem:[%s192 + $0xc0] sm:$0xff] %v695
      %728 = vst [vmem:[%s192 + $0xc8] sm:$0xff] %v696
      %729 = vst [vmem:[%s192 + $0xd0] sm:$0xff] %v697
      %730 = vst [vmem:[%s192 + $0xd8] sm:$0xff] %v698
      %731 = vst [vmem:[%s192 + $0xe0] sm:$0xff] %v699
      %732 = vst [vmem:[%s192 + $0xe8] sm:$0xff] %v700
      %733 = vst [vmem:[%s192 + $0xf0] sm:$0xff] %v701
      %734 = vst [vmem:[%s192 + $0xf8] sm:$0xff] %v702
      %s735 = smul.u32 32, %s19
      %p736 = scmp.lt.s32.totalorder %s18, 1
      %s737 = scalar_select %p736, %s18, 1
      %p738 = scmp.lt.s32.totalorder %s735, 31
      %s739 = scalar_select %p738, %s735, 31
      %s740 = smul.addr %s737, 32
      %s741 = sadd.s32 %s739, %s740
      %s742 = smul.addr %s741, 8
      %s743 = scalar_lea.vmem %s3, %s742
      // Predicated region
      $region33: #{dis_conv_module_forward.4} parent=31 // pred_check
        %p744 = pneg %p114
      $region34: #{dis_conv_module_forward.4} parent=31 // pred_check_branch
        %746 = sbr.rel (%p744) target = $region36
      $region35: #{dis_conv_module_forward.4} parent=31 // pred_region
        %s747 = smul.u32 32, %s19
      $region36: #{dis_conv_module_forward.4} parent=31 // pred_fallthru
        _
    $region32: #{dis_conv_module_forward.4} parent=5 // pred_fallthru
      _
    %p748 = scmp.le.s32.totalorder 2, %s9
    // Predicated region
    $region37: #{dis_conv_module_forward.4} parent=5 // pred_check
      %p749 = pneg %p748
    $region38: #{dis_conv_module_forward.4} parent=5 // pred_check_branch
      %751 = sbr.rel (%p749) target = $region40
    $region39: #{dis_conv_module_forward.4} parent=5 // pred_region
      %s752 = ssub.s32 %s9, 2
      // Predicated region
      $region41: #{dis_conv_module_forward.4} parent=39 // pred_check
        %p753 = pneg %p120
      $region42: #{dis_conv_module_forward.4} parent=39 // pred_check_branch
        %755 = sbr.rel (%p753) target = $region44
      $region43: #{dis_conv_module_forward.4} parent=39 // pred_region
        %s756 = smul.u32 32, %s21
        %p757 = scmp.lt.s32.totalorder %s20, 1
        %s758 = scalar_select %p757, %s20, 1
        %p759 = scmp.lt.s32.totalorder %s756, 31
        %s760 = scalar_select %p759, %s756, 31
        %s761 = smul.addr %s758, 32
        %s762 = sadd.s32 %s760, %s761
        %s763 = smul.addr %s762, 8
        %s764 = scalar_lea.vmem %s3, %s763
      $region44: #{dis_conv_module_forward.4} parent=39 // pred_fallthru
        _
    $region40: #{dis_conv_module_forward.4} parent=5 // pred_fallthru
      _
  $region6: #{dis_conv_module_forward.4} parent=0 // loop_footer
    %s13 = sadd.s32 1, %s9
  $region7: #{dis_conv_module_forward.4} parent=0 // loop_footer_branch
    %8 = sbr.rel target = $region3
  $region8: #{dis_conv_module_forward.4} parent=0 // loop_exit
    _

// kernel: dis_conv_module_forward.5
$region0: #{dis_conv_module_forward.5}
  #allocation0 [shape = 'u32[]', space=smem, size = 0x4, offset = 0x4, fixed_abs, tag = 'smem constant byte address 0x4 - core index']
  #allocation1 [shape = 'u32[72,128]{1,0:T(1,128)}', space=vmem, size = 0x9000, scoped, tag = 'internal scratch']
  %s0 = inlined_call_operand.vmem [shape: f32[2,8,8,288], index: 0, kind: input, shape index: {}]
  %s1 = inlined_call_operand.vmem [shape: f32[1,288,128], index: 1, kind: input, shape index: {}]
  %s2 = inlined_call_operand.vmem [shape: f32[1,128], index: 2, kind: input, shape index: {}]
  %s3 = inlined_call_operand.vmem [shape: f32[2,64,128], index: 3, kind: output, shape index: {}]
  %s4 = sld [smem:[#allocation0]]
  $region45: #{dis_conv_module_forward.5} parent=0
    _
  %s6 = ssub.s32 1, %s4
  %s7 = scalar_select 0, %s6, %s4
  loop: start=0, step=1, limit=4
  $region2: #{dis_conv_module_forward.5} parent=0 // loop_pre_header
    _
  $region3: #{dis_conv_module_forward.5} parent=0 // loop_header
    %s9 = sphi 0, %s13
    %p10 = scmp.ge.s32.totalorder %s9, 4
    %s16 = sphi 0, %s28
    %s17 = sphi 0, %s24
    %s18 = sphi 0, %s16
    %s19 = sphi 0, %s17
    %s20 = sphi 0, %s18
    %s21 = sphi 0, %s19
    %s31 = sphi 0, %s33
    %s34 = sphi 0, %s31
    %s35 = sphi 0, %s34
    %s51 = sphi 0, %s35
    %s55 = sphi 0, %s55
    %s57 = sphi 0, %s55
    %s58 = sphi 0, %s57
    %s72 = sphi 0, %s58
    %s76 = sphi 0, %s76
    %s78 = sphi 0, %s76
    %s79 = sphi 0, %s78
    %s93 = sphi 0, %s79
    %s101 = sphi 0, %s103
    %s104 = sphi 0, %s101
    %s105 = sphi 0, %s104
    %s121 = sphi 0, %s105
  $region4: #{dis_conv_module_forward.5} parent=0 // loop_header_branch
    %12 = sbr.rel (%p10) target = $region8
  $region5: #{dis_conv_module_forward.5} parent=0 // loop_body
    %s14 = ssub.s32 %s9, 1
    %s15 = ssub.s32 %s9, 2
    %s22 = sadd.s32 1, %s17
    %p23 = scmp.ge.s32.totalorder %s22, 1
    %s24 = scalar_select %p23, 0, %s22
    %s25 = sadd.s32 1, %s16
    %s26 = scalar_select %p23, %s25, %s16
    %p27 = scmp.ge.s32.totalorder %s26, 2
    %s28 = scalar_select %p27, 0, %s26
    %s29 = ssub.s32 %s16, %s28
    %p30 = scmp.eq.s32.totalorder %s29, 0
    %s32 = sadd.s32 %s31, 1
    %s33 = scalar_select %p30, %s31, %s32
    %p36 = pneg %p30
    %p37 = scmp.eq.s32.totalorder %s9, 1
    %p38 = por %p36, %p37
    %p39 = scmp.ne.s32.totalorder %s31, %s34
    %p40 = scmp.eq.s32.totalorder %s9, 0
    %p41 = por %p39, %p40
    %p42 = scmp.ne.s32.totalorder %s31, %s34
    %p43 = scmp.eq.s32.totalorder %s14, 1
    %p44 = por %p42, %p43
    %p45 = scmp.ne.s32.totalorder %s34, %s35
    %p46 = scmp.eq.s32.totalorder %s14, 0
    %p47 = por %p45, %p46
    %p48 = scmp.ne.s32.totalorder %s34, %s35
    %p49 = scmp.eq.s32.totalorder %s15, 1
    %p50 = por %p48, %p49
    %p52 = scmp.ne.s32.totalorder %s35, %s51
    %p53 = scmp.eq.s32.totalorder %s15, 0
    %p54 = por %p52, %p53
    %s56 = sadd.s32 %s55, 1
    %p59 = scmp.eq.s32.totalorder %s9, 1
    %p60 = scmp.ne.s32.totalorder %s55, %s57
    %p61 = scmp.eq.s32.totalorder %s9, 0
    %p62 = por %p60, %p61
    %p63 = scmp.ne.s32.totalorder %s55, %s57
    %p64 = scmp.eq.s32.totalorder %s14, 1
    %p65 = por %p63, %p64
    %p66 = scmp.ne.s32.totalorder %s57, %s58
    %p67 = scmp.eq.s32.totalorder %s14, 0
    %p68 = por %p66, %p67
    %p69 = scmp.ne.s32.totalorder %s57, %s58
    %p70 = scmp.eq.s32.totalorder %s15, 1
    %p71 = por %p69, %p70
    %p73 = scmp.ne.s32.totalorder %s58, %s72
    %p74 = scmp.eq.s32.totalorder %s15, 0
    %p75 = por %p73, %p74
    %s77 = sadd.s32 %s76, 1
    %p80 = scmp.eq.s32.totalorder %s9, 1
    %p81 = scmp.ne.s32.totalorder %s76, %s78
    %p82 = scmp.eq.s32.totalorder %s9, 0
    %p83 = por %p81, %p82
    %p84 = scmp.ne.s32.totalorder %s76, %s78
    %p85 = scmp.eq.s32.totalorder %s14, 1
    %p86 = por %p84, %p85
    %p87 = scmp.ne.s32.totalorder %s78, %s79
    %p88 = scmp.eq.s32.totalorder %s14, 0
    %p89 = por %p87, %p88
    %p90 = scmp.ne.s32.totalorder %s78, %s79
    %p91 = scmp.eq.s32.totalorder %s15, 1
    %p92 = por %p90, %p91
    %p94 = scmp.ne.s32.totalorder %s79, %s93
    %p95 = scmp.eq.s32.totalorder %s15, 0
    %p96 = por %p94, %p95
    %s97 = ssub.s32 %s16, %s28
    %s98 = ssub.s32 %s17, %s24
    %s99 = sor.u32 %s97, %s98
    %p100 = scmp.eq.s32.totalorder %s99, 0
    %s102 = sadd.s32 %s101, 1
    %s103 = scalar_select %p100, %s101, %s102
    %p106 = pneg %p100
    %p107 = scmp.eq.s32.totalorder %s9, 1
    %p108 = por %p106, %p107
    %p109 = scmp.ne.s32.totalorder %s101, %s104
    %p110 = scmp.eq.s32.totalorder %s9, 0
    %p111 = por %p109, %p110
    %p112 = scmp.ne.s32.totalorder %s101, %s104
    %p113 = scmp.eq.s32.totalorder %s14, 1
    %p114 = por %p112, %p113
    %p115 = scmp.ne.s32.totalorder %s104, %s105
    %p116 = scmp.eq.s32.totalorder %s14, 0
    %p117 = por %p115, %p116
    %p118 = scmp.ne.s32.totalorder %s104, %s105
    %p119 = scmp.eq.s32.totalorder %s15, 1
    %p120 = por %p118, %p119
    %p122 = scmp.ne.s32.totalorder %s105, %s121
    %p123 = scmp.eq.s32.totalorder %s15, 0
    %p124 = por %p122, %p123
    %p125 = scmp.le.s32.totalorder 1, %s9
    %p126 = scmp.lt.s32.totalorder %s9, 3
    %p127 = pnand %p125, %p126
    %p128 = pneg %p127
    // Predicated region
    $region9: #{dis_conv_module_forward.5} parent=5 // pred_check
      _
    $region10: #{dis_conv_module_forward.5} parent=5 // pred_check_branch
      %130 = sbr.rel (%p127) target = $region12
    $region11: #{dis_conv_module_forward.5} parent=5 // pred_region
      %s131 = ssub.s32 %s9, 1
      // Predicated region
      $region13: #{dis_conv_module_forward.5} parent=11 // pred_check
        %p132 = pneg %p68
      $region14: #{dis_conv_module_forward.5} parent=11 // pred_check_branch
        %134 = sbr.rel (%p132) target = $region16
      $region15: #{dis_conv_module_forward.5} parent=11 // pred_region
        _
      $region16: #{dis_conv_module_forward.5} parent=11 // pred_fallthru
        _
      // Predicated region
      $region17: #{dis_conv_module_forward.5} parent=11 // pred_check
        %p135 = pneg %p89
      $region18: #{dis_conv_module_forward.5} parent=11 // pred_check_branch
        %137 = sbr.rel (%p135) target = $region20
      $region19: #{dis_conv_module_forward.5} parent=11 // pred_region
        _
      $region20: #{dis_conv_module_forward.5} parent=11 // pred_fallthru
        _
    $region12: #{dis_conv_module_forward.5} parent=5 // pred_fallthru
      _
    %p138 = scmp.lt.s32.totalorder %s9, 2
    // Predicated region
    $region21: #{dis_conv_module_forward.5} parent=5 // pred_check
      %p139 = pneg %p138
    $region22: #{dis_conv_module_forward.5} parent=5 // pred_check_branch
      %141 = sbr.rel (%p139) target = $region24
    $region23: #{dis_conv_module_forward.5} parent=5 // pred_region
      // Predicated region
      $region25: #{dis_conv_module_forward.5} parent=23 // pred_check
        %p142 = pneg %p41
      $region26: #{dis_conv_module_forward.5} parent=23 // pred_check_branch
        %144 = sbr.rel (%p142) target = $region28
      $region27: #{dis_conv_module_forward.5} parent=23 // pred_region
        %p145 = scmp.lt.s32.totalorder %s16, 1
        %s146 = scalar_select %p145, %s16, 1
        %s147 = smul.addr %s146, 24
        %s148 = smul.addr %s147, 8
        %s149 = scalar_lea.vmem %s0, %s148
      $region28: #{dis_conv_module_forward.5} parent=23 // pred_fallthru
        _
    $region24: #{dis_conv_module_forward.5} parent=5 // pred_fallthru
      _
    %p150 = scmp.le.s32.totalorder 1, %s9
    %p151 = scmp.lt.s32.totalorder %s9, 3
    %p152 = pnand %p150, %p151
    %p153 = pneg %p152
    // Predicated region
    $region29: #{dis_conv_module_forward.5} parent=5 // pred_check
      _
    $region30: #{dis_conv_module_forward.5} parent=5 // pred_check_branch
      %155 = sbr.rel (%p152) target = $region32
    $region31: #{dis_conv_module_forward.5} parent=5 // pred_region
      %s156 = ssub.s32 %s9, 1
      %p157 = scmp.lt.s32.totalorder %s18, 1
      %s158 = scalar_select %p157, %s18, 1
      %s159 = smul.addr %s158, 24
      %s160 = smul.addr %s159, 8
      %s161 = scalar_lea.vmem %s0, %s160
      %p162 = pneg %p47
      %p163 = pneg %p44
      %p164 = pneg %p68
      %p165 = pneg %p65
      %p166 = pneg %p89
      %p167 = pneg %p86
      %p168 = pneg %p117
      %p169 = pneg %p114
      %s170 = smul.u32 8, %s19
      %p171 = scmp.lt.s32.totalorder %s18, 1
      %s172 = scalar_select %p171, %s18, 1
      %p173 = scmp.lt.s32.totalorder %s170, 7
      %s174 = scalar_select %p173, %s170, 7
      %s175 = smul.addr %s172, 8
      %s176 = sadd.s32 %s174, %s175
      %s177 = smul.addr %s176, 8
      %s178 = scalar_lea.vmem %s3, %s177
      %p179 = scmp.lt.s32.totalorder %s18, 1
      %s180 = scalar_select %p179, %s18, 1
      %s181 = smul.addr %s180, 24
      %s182 = smul.addr %s181, 8
      %s183 = scalar_lea.vmem %s0, %s182
      %s184 = smul.u32 8, %s19
      %p185 = scmp.lt.s32.totalorder %s18, 1
      %s186 = scalar_select %p185, %s18, 1
      %p187 = scmp.lt.s32.totalorder %s184, 7
      %s188 = scalar_select %p187, %s184, 7
      %s189 = smul.addr %s186, 8
      %s190 = sadd.s32 %s188, %s189
      %s191 = smul.addr %s190, 8
      %s192 = scalar_lea.vmem %s3, %s191
      %s193 = smul.u32 8, %s19
      %s194 = smul.u32 %s19, 8
      %v195 = vld [vmem:[%s2] sm:$0x1]
      %s196 = smul.u32 %s194, 3
      %s197 = smul.addr %s196, 8
      %s198 = scalar_lea.vmem %s183, %s197
      %v199 = vld [vmem:[%s198] sm:$0xff]
      %v200 = vld [vmem:[%s198 + $0x8] sm:$0xff]
      %v201 = vld [vmem:[%s198 + $0x10] sm:$0xff]
      %v202 = vld [vmem:[%s198 + $0x18] sm:$0xff]
      %v203 = vld [vmem:[%s198 + $0x20] sm:$0xff]
      %v204 = vld [vmem:[%s198 + $0x28] sm:$0xff]
      %v205 = vld [vmem:[%s198 + $0x30] sm:$0xff]
      %v206 = vld [vmem:[%s198 + $0x38] sm:$0xff]
      %v207 = vld [vmem:[%s198 + $0x40] sm:$0xff]
      %v208 = vld [vmem:[%s198 + $0x48] sm:$0xff]
      %v209 = vld [vmem:[%s198 + $0x50] sm:$0xff]
      %v210 = vld [vmem:[%s198 + $0x58] sm:$0xff]
      %v211 = vld [vmem:[%s198 + $0x60] sm:$0xff]
      %v212 = vld [vmem:[%s198 + $0x68] sm:$0xff]
      %v213 = vld [vmem:[%s198 + $0x70] sm:$0xff]
      %v214 = vld [vmem:[%s198 + $0x78] sm:$0xff]
      %v215 = vld [vmem:[%s198 + $0x80] sm:$0xff]
      %v216 = vld [vmem:[%s198 + $0x88] sm:$0xff]
      %v217 = vld [vmem:[%s198 + $0x90] sm:$0xff]
      %v218 = vld [vmem:[%s198 + $0x98] sm:$0xff]
      %v219 = vld [vmem:[%s198 + $0xa0] sm:$0xff]
      %v220 = vld [vmem:[%s198 + $0xa8] sm:$0xff]
      %v221 = vld [vmem:[%s198 + $0xb0] sm:$0xff]
      %v222 = vld [vmem:[%s198 + $0xb8] sm:$0xff]
      %v223 = vld [vmem:[%s1] sm:$0xff]
      %v224 = vld [vmem:[%s1 + $0x8] sm:$0xff]
      %v225 = vld [vmem:[%s1 + $0x10] sm:$0xff]
      %v226 = vld [vmem:[%s1 + $0x18] sm:$0xff]
      %v227 = vld [vmem:[%s1 + $0x20] sm:$0xff]
      %v228 = vld [vmem:[%s1 + $0x28] sm:$0xff]
      %v229 = vld [vmem:[%s1 + $0x30] sm:$0xff]
      %v230 = vld [vmem:[%s1 + $0x38] sm:$0xff]
      %v231 = vld [vmem:[%s1 + $0x40] sm:$0xff]
      %v232 = vld [vmem:[%s1 + $0x48] sm:$0xff]
      %v233 = vld [vmem:[%s1 + $0x50] sm:$0xff]
      %v234 = vld [vmem:[%s1 + $0x58] sm:$0xff]
      %v235 = vld [vmem:[%s1 + $0x60] sm:$0xff]
      %v236 = vld [vmem:[%s1 + $0x68] sm:$0xff]
      %v237 = vld [vmem:[%s1 + $0x70] sm:$0xff]
      %v238 = vld [vmem:[%s1 + $0x78] sm:$0xff]
      %v239 = vld [vmem:[%s1 + $0x80] sm:$0xff]
      %v240 = vld [vmem:[%s1 + $0x88] sm:$0xff]
      %v241 = vld [vmem:[%s1 + $0x90] sm:$0xff]
      %v242 = vld [vmem:[%s1 + $0x98] sm:$0xff]
      %v243 = vld [vmem:[%s1 + $0xa0] sm:$0xff]
      %v244 = vld [vmem:[%s1 + $0xa8] sm:$0xff]
      %v245 = vld [vmem:[%s1 + $0xb0] sm:$0xff]
      %v246 = vld [vmem:[%s1 + $0xb8] sm:$0xff]
      %v247 = vld [vmem:[%s1 + $0xc0] sm:$0xff]
      %v248 = vld [vmem:[%s1 + $0xc8] sm:$0xff]
      %v249 = vld [vmem:[%s1 + $0xd0] sm:$0xff]
      %v250 = vld [vmem:[%s1 + $0xd8] sm:$0xff]
      %v251 = vld [vmem:[%s1 + $0xe0] sm:$0xff]
      %v252 = vld [vmem:[%s1 + $0xe8] sm:$0xff]
      %v253 = vld [vmem:[%s1 + $0xf0] sm:$0xff]
      %v254 = vld [vmem:[%s1 + $0xf8] sm:$0xff]
      %v255 = vld [vmem:[%s1 + $0x100] sm:$0xff]
      %v256 = vld [vmem:[%s1 + $0x108] sm:$0xff]
      %v257 = vld [vmem:[%s1 + $0x110] sm:$0xff]
      %v258 = vld [vmem:[%s1 + $0x118] sm:$0xff]
      %v260 = vperm.slane %v195, 0
      %vm262 = vcmask 261120
      %v264 = vsel %vm262, %v201, 0
      %v267 = vsel %vm262, %v204, 0
      %v270 = vsel %vm262, %v207, 0
      %v273 = vsel %vm262, %v210, 0
      %v276 = vsel %vm262, %v213, 0
      %v279 = vsel %vm262, %v216, 0
      %v282 = vsel %vm262, %v219, 0
      %v285 = vsel %vm262, %v222, 0
      %287 = vmatpush.msra.mxu0 %v238
      %288 = vmatpush.msra.mxu0 %v237
      %289 = vmatpush.msra.mxu0 %v236
      %290 = vmatpush.msra.mxu0 %v235
      %291 = vmatpush.msra.mxu0 %v234
      %292 = vmatpush.msra.mxu0 %v233
      %293 = vmatpush.msra.mxu0 %v232
      %294 = vmatpush.msra.mxu0 %v231
      %295 = vmatpush.msra.mxu0 %v230
      %296 = vmatpush.msra.mxu0 %v229
      %297 = vmatpush.msra.mxu0 %v228
      %298 = vmatpush.msra.mxu0 %v227
      %299 = vmatpush.msra.mxu0 %v226
      %300 = vmatpush.msra.mxu0 %v225
      %301 = vmatpush.msra.mxu0 %v224
      %302 = vmatpush.msra.mxu0 %v223
      %303 = vmatmul.f32.gmra.mxu0 %v199
      %v304 = vpop.f32.mrf.mxu0
      %v305 = vadd.f32 %v260, %v304
      %306 = vmatmul.f32.gmra.mxu0 %v202
      %v307 = vpop.f32.mrf.mxu0
      %v308 = vadd.f32 %v260, %v307
      %309 = vmatmul.f32.gmra.mxu0 %v205
      %v310 = vpop.f32.mrf.mxu0
      %v311 = vadd.f32 %v260, %v310
      %312 = vmatmul.f32.gmra.mxu0 %v208
      %v313 = vpop.f32.mrf.mxu0
      %v314 = vadd.f32 %v260, %v313
      %315 = vmatmul.f32.gmra.mxu0 %v211
      %v316 = vpop.f32.mrf.mxu0
      %v317 = vadd.f32 %v260, %v316
      %318 = vmatmul.f32.gmra.mxu0 %v214
      %v319 = vpop.f32.mrf.mxu0
      %v320 = vadd.f32 %v260, %v319
      %321 = vmatmul.f32.gmra.mxu0 %v217
      %v322 = vpop.f32.mrf.mxu0
      %v323 = vadd.f32 %v260, %v322
      %324 = vmatmul.f32.gmra.mxu0 %v220
      %v325 = vpop.f32.mrf.mxu0
      %v326 = vadd.f32 %v260, %v325
      %327 = vdwg.mxu0
      %328 = vmatpush.msra.mxu0 %v254
      %329 = vmatpush.msra.mxu0 %v253
      %330 = vmatpush.msra.mxu0 %v252
      %331 = vmatpush.msra.mxu0 %v251
      %332 = vmatpush.msra.mxu0 %v250
      %333 = vmatpush.msra.mxu0 %v249
      %334 = vmatpush.msra.mxu0 %v248
      %335 = vmatpush.msra.mxu0 %v247
      %336 = vmatpush.msra.mxu0 %v246
      %337 = vmatpush.msra.mxu0 %v245
      %338 = vmatpush.msra.mxu0 %v244
      %339 = vmatpush.msra.mxu0 %v243
      %340 = vmatpush.msra.mxu0 %v242
      %341 = vmatpush.msra.mxu0 %v241
      %342 = vmatpush.msra.mxu0 %v240
      %343 = vmatpush.msra.mxu0 %v239
      %344 = vmatmul.f32.gmra.mxu0 %v200
      %v345 = vpop.f32.mrf.mxu0
      %v346 = vadd.f32 %v305, %v345
      %347 = vmatmul.f32.gmra.mxu0 %v203
      %v348 = vpop.f32.mrf.mxu0
      %v349 = vadd.f32 %v308, %v348
      %350 = vmatmul.f32.gmra.mxu0 %v206
      %v351 = vpop.f32.mrf.mxu0
      %v352 = vadd.f32 %v311, %v351
      %353 = vmatmul.f32.gmra.mxu0 %v209
      %v354 = vpop.f32.mrf.mxu0
      %v355 = vadd.f32 %v314, %v354
      %356 = vmatmul.f32.gmra.mxu0 %v212
      %v357 = vpop.f32.mrf.mxu0
      %v358 = vadd.f32 %v317, %v357
      %359 = vmatmul.f32.gmra.mxu0 %v215
      %v360 = vpop.f32.mrf.mxu0
      %v361 = vadd.f32 %v320, %v360
      %362 = vmatmul.f32.gmra.mxu0 %v218
      %v363 = vpop.f32.mrf.mxu0
      %v364 = vadd.f32 %v323, %v363
      %365 = vmatmul.f32.gmra.mxu0 %v221
      %v366 = vpop.f32.mrf.mxu0
      %v367 = vadd.f32 %v326, %v366
      %368 = vdwg.mxu0
      %369 = vmatpush.msra.mxu0 0.0
      %370 = vmatpush.msra.mxu0 0.0
      %371 = vmatpush.msra.mxu0 0.0
      %372 = vmatpush.msra.mxu0 0.0
      %373 = vmatpush.msra.mxu0 0.0
      %374 = vmatpush.msra.mxu0 0.0
      %375 = vmatpush.msra.mxu0 0.0
      %376 = vmatpush.msra.mxu0 0.0
      %377 = vmatpush.msra.mxu0 0.0
      %378 = vmatpush.msra.mxu0 0.0
      %379 = vmatpush.msra.mxu0 0.0
      %380 = vmatpush.msra.mxu0 0.0
      %381 = vmatpush.msra.mxu0 %v258
      %382 = vmatpush.msra.mxu0 %v257
      %383 = vmatpush.msra.mxu0 %v256
      %384 = vmatpush.msra.mxu0 %v255
      %385 = vmatmul.f32.gmra.mxu0 %v264
      %v386 = vpop.f32.mrf.mxu0
      %v387 = vadd.f32 %v346, %v386
      %388 = vmatmul.f32.gmra.mxu0 %v267
      %v389 = vpop.f32.mrf.mxu0
      %v390 = vadd.f32 %v349, %v389
      %391 = vmatmul.f32.gmra.mxu0 %v270
      %v392 = vpop.f32.mrf.mxu0
      %v393 = vadd.f32 %v352, %v392
      %394 = vmatmul.f32.gmra.mxu0 %v273
      %v395 = vpop.f32.mrf.mxu0
      %v396 = vadd.f32 %v355, %v395
      %397 = vmatmul.f32.gmra.mxu0 %v276
      %v398 = vpop.f32.mrf.mxu0
      %v399 = vadd.f32 %v358, %v398
      %400 = vmatmul.f32.gmra.mxu0 %v279
      %v401 = vpop.f32.mrf.mxu0
      %v402 = vadd.f32 %v361, %v401
      %403 = vmatmul.f32.gmra.mxu0 %v282
      %v404 = vpop.f32.mrf.mxu0
      %v405 = vadd.f32 %v364, %v404
      %406 = vmatmul.f32.gmra.mxu0 %v285
      %v407 = vpop.f32.mrf.mxu0
      %v408 = vadd.f32 %v367, %v407
      %409 = vdwg.mxu0
      %vm410 = vcmp.gt.f32.partialorder %v387, 0.0
      %vm411 = vcmp.gt.f32.partialorder %v390, 0.0
      %vm412 = vcmp.gt.f32.partialorder %v393, 0.0
      %vm413 = vcmp.gt.f32.partialorder %v396, 0.0
      %vm414 = vcmp.gt.f32.partialorder %v399, 0.0
      %vm415 = vcmp.gt.f32.partialorder %v402, 0.0
      %vm416 = vcmp.gt.f32.partialorder %v405, 0.0
      %vm417 = vcmp.gt.f32.partialorder %v408, 0.0
      %v418 = vmul.f32 %v387, 0.2
      %v419 = vmul.f32 %v390, 0.2
      %v420 = vmul.f32 %v393, 0.2
      %v421 = vmul.f32 %v396, 0.2
      %v422 = vmul.f32 %v399, 0.2
      %v423 = vmul.f32 %v402, 0.2
      %v424 = vmul.f32 %v405, 0.2
      %v425 = vmul.f32 %v408, 0.2
      %v426 = vsel %vm410, %v387, %v418
      %v427 = vsel %vm411, %v390, %v419
      %v428 = vsel %vm412, %v393, %v420
      %v429 = vsel %vm413, %v396, %v421
      %v430 = vsel %vm414, %v399, %v422
      %v431 = vsel %vm415, %v402, %v423
      %v432 = vsel %vm416, %v405, %v424
      %v433 = vsel %vm417, %v408, %v425
      %434 = vst [vmem:[%s192] sm:$0xff] %v426
      %435 = vst [vmem:[%s192 + $0x8] sm:$0xff] %v427
      %436 = vst [vmem:[%s192 + $0x10] sm:$0xff] %v428
      %437 = vst [vmem:[%s192 + $0x18] sm:$0xff] %v429
      %438 = vst [vmem:[%s192 + $0x20] sm:$0xff] %v430
      %439 = vst [vmem:[%s192 + $0x28] sm:$0xff] %v431
      %440 = vst [vmem:[%s192 + $0x30] sm:$0xff] %v432
      %441 = vst [vmem:[%s192 + $0x38] sm:$0xff] %v433
      %s442 = smul.u32 8, %s19
      %p443 = scmp.lt.s32.totalorder %s18, 1
      %s444 = scalar_select %p443, %s18, 1
      %p445 = scmp.lt.s32.totalorder %s442, 7
      %s446 = scalar_select %p445, %s442, 7
      %s447 = smul.addr %s444, 8
      %s448 = sadd.s32 %s446, %s447
      %s449 = smul.addr %s448, 8
      %s450 = scalar_lea.vmem %s3, %s449
      // Predicated region
      $region33: #{dis_conv_module_forward.5} parent=31 // pred_check
        %p451 = pneg %p114
      $region34: #{dis_conv_module_forward.5} parent=31 // pred_check_branch
        %453 = sbr.rel (%p451) target = $region36
      $region35: #{dis_conv_module_forward.5} parent=31 // pred_region
        %s454 = smul.u32 8, %s19
      $region36: #{dis_conv_module_forward.5} parent=31 // pred_fallthru
        _
    $region32: #{dis_conv_module_forward.5} parent=5 // pred_fallthru
      _
    %p455 = scmp.le.s32.totalorder 2, %s9
    // Predicated region
    $region37: #{dis_conv_module_forward.5} parent=5 // pred_check
      %p456 = pneg %p455
    $region38: #{dis_conv_module_forward.5} parent=5 // pred_check_branch
      %458 = sbr.rel (%p456) target = $region40
    $region39: #{dis_conv_module_forward.5} parent=5 // pred_region
      %s459 = ssub.s32 %s9, 2
      // Predicated region
      $region41: #{dis_conv_module_forward.5} parent=39 // pred_check
        %p460 = pneg %p120
      $region42: #{dis_conv_module_forward.5} parent=39 // pred_check_branch
        %462 = sbr.rel (%p460) target = $region44
      $region43: #{dis_conv_module_forward.5} parent=39 // pred_region
        %s463 = smul.u32 8, %s21
        %p464 = scmp.lt.s32.totalorder %s20, 1
        %s465 = scalar_select %p464, %s20, 1
        %p466 = scmp.lt.s32.totalorder %s463, 7
        %s467 = scalar_select %p466, %s463, 7
        %s468 = smul.addr %s465, 8
        %s469 = sadd.s32 %s467, %s468
        %s470 = smul.addr %s469, 8
        %s471 = scalar_lea.vmem %s3, %s470
      $region44: #{dis_conv_module_forward.5} parent=39 // pred_fallthru
        _
    $region40: #{dis_conv_module_forward.5} parent=5 // pred_fallthru
      _
  $region6: #{dis_conv_module_forward.5} parent=0 // loop_footer
    %s13 = sadd.s32 1, %s9
  $region7: #{dis_conv_module_forward.5} parent=0 // loop_footer_branch
    %8 = sbr.rel target = $region3
  $region8: #{dis_conv_module_forward.5} parent=0 // loop_exit
    _

// kernel: dis_conv_module_forward.6
$region0: #{dis_conv_module_forward.6}
  #allocation0 [shape = 'u32[]', space=smem, size = 0x4, offset = 0x4, fixed_abs, tag = 'smem constant byte address 0x4 - core index']
  #allocation1 [shape = 'u32[72,128]{1,0:T(1,128)}', space=vmem, size = 0x9000, scoped, tag = 'internal scratch']
  %s0 = inlined_call_operand.vmem [shape: f32[2,6,8,192], index: 0, kind: input, shape index: {}]
  %s1 = inlined_call_operand.vmem [shape: f32[3,192,128], index: 1, kind: input, shape index: {}]
  %s2 = inlined_call_operand.vmem [shape: f32[1,128], index: 2, kind: input, shape index: {}]
  %s3 = inlined_call_operand.vmem [shape: f32[2,32,128], index: 3, kind: output, shape index: {}]
  %s4 = sld [smem:[#allocation0]]
  $region45: #{dis_conv_module_forward.6} parent=0
    _
  %s6 = ssub.s32 1, %s4
  %s7 = scalar_select 0, %s6, %s4
  loop: start=0, step=1, limit=4
  $region2: #{dis_conv_module_forward.6} parent=0 // loop_pre_header
    _
  $region3: #{dis_conv_module_forward.6} parent=0 // loop_header
    %s9 = sphi 0, %s13
    %p10 = scmp.ge.s32.totalorder %s9, 4
    %s16 = sphi 0, %s28
    %s17 = sphi 0, %s24
    %s18 = sphi 0, %s16
    %s19 = sphi 0, %s17
    %s20 = sphi 0, %s18
    %s21 = sphi 0, %s19
    %s31 = sphi 0, %s33
    %s34 = sphi 0, %s31
    %s35 = sphi 0, %s34
    %s51 = sphi 0, %s35
    %s55 = sphi 0, %s55
    %s57 = sphi 0, %s55
    %s58 = sphi 0, %s57
    %s72 = sphi 0, %s58
    %s76 = sphi 0, %s76
    %s78 = sphi 0, %s76
    %s79 = sphi 0, %s78
    %s93 = sphi 0, %s79
    %s101 = sphi 0, %s103
    %s104 = sphi 0, %s101
    %s105 = sphi 0, %s104
    %s121 = sphi 0, %s105
  $region4: #{dis_conv_module_forward.6} parent=0 // loop_header_branch
    %12 = sbr.rel (%p10) target = $region8
  $region5: #{dis_conv_module_forward.6} parent=0 // loop_body
    %s14 = ssub.s32 %s9, 1
    %s15 = ssub.s32 %s9, 2
    %s22 = sadd.s32 1, %s17
    %p23 = scmp.ge.s32.totalorder %s22, 1
    %s24 = scalar_select %p23, 0, %s22
    %s25 = sadd.s32 1, %s16
    %s26 = scalar_select %p23, %s25, %s16
    %p27 = scmp.ge.s32.totalorder %s26, 2
    %s28 = scalar_select %p27, 0, %s26
    %s29 = ssub.s32 %s16, %s28
    %p30 = scmp.eq.s32.totalorder %s29, 0
    %s32 = sadd.s32 %s31, 1
    %s33 = scalar_select %p30, %s31, %s32
    %p36 = pneg %p30
    %p37 = scmp.eq.s32.totalorder %s9, 1
    %p38 = por %p36, %p37
    %p39 = scmp.ne.s32.totalorder %s31, %s34
    %p40 = scmp.eq.s32.totalorder %s9, 0
    %p41 = por %p39, %p40
    %p42 = scmp.ne.s32.totalorder %s31, %s34
    %p43 = scmp.eq.s32.totalorder %s14, 1
    %p44 = por %p42, %p43
    %p45 = scmp.ne.s32.totalorder %s34, %s35
    %p46 = scmp.eq.s32.totalorder %s14, 0
    %p47 = por %p45, %p46
    %p48 = scmp.ne.s32.totalorder %s34, %s35
    %p49 = scmp.eq.s32.totalorder %s15, 1
    %p50 = por %p48, %p49
    %p52 = scmp.ne.s32.totalorder %s35, %s51
    %p53 = scmp.eq.s32.totalorder %s15, 0
    %p54 = por %p52, %p53
    %s56 = sadd.s32 %s55, 1
    %p59 = scmp.eq.s32.totalorder %s9, 1
    %p60 = scmp.ne.s32.totalorder %s55, %s57
    %p61 = scmp.eq.s32.totalorder %s9, 0
    %p62 = por %p60, %p61
    %p63 = scmp.ne.s32.totalorder %s55, %s57
    %p64 = scmp.eq.s32.totalorder %s14, 1
    %p65 = por %p63, %p64
    %p66 = scmp.ne.s32.totalorder %s57, %s58
    %p67 = scmp.eq.s32.totalorder %s14, 0
    %p68 = por %p66, %p67
    %p69 = scmp.ne.s32.totalorder %s57, %s58
    %p70 = scmp.eq.s32.totalorder %s15, 1
    %p71 = por %p69, %p70
    %p73 = scmp.ne.s32.totalorder %s58, %s72
    %p74 = scmp.eq.s32.totalorder %s15, 0
    %p75 = por %p73, %p74
    %s77 = sadd.s32 %s76, 1
    %p80 = scmp.eq.s32.totalorder %s9, 1
    %p81 = scmp.ne.s32.totalorder %s76, %s78
    %p82 = scmp.eq.s32.totalorder %s9, 0
    %p83 = por %p81, %p82
    %p84 = scmp.ne.s32.totalorder %s76, %s78
    %p85 = scmp.eq.s32.totalorder %s14, 1
    %p86 = por %p84, %p85
    %p87 = scmp.ne.s32.totalorder %s78, %s79
    %p88 = scmp.eq.s32.totalorder %s14, 0
    %p89 = por %p87, %p88
    %p90 = scmp.ne.s32.totalorder %s78, %s79
    %p91 = scmp.eq.s32.totalorder %s15, 1
    %p92 = por %p90, %p91
    %p94 = scmp.ne.s32.totalorder %s79, %s93
    %p95 = scmp.eq.s32.totalorder %s15, 0
    %p96 = por %p94, %p95
    %s97 = ssub.s32 %s16, %s28
    %s98 = ssub.s32 %s17, %s24
    %s99 = sor.u32 %s97, %s98
    %p100 = scmp.eq.s32.totalorder %s99, 0
    %s102 = sadd.s32 %s101, 1
    %s103 = scalar_select %p100, %s101, %s102
    %p106 = pneg %p100
    %p107 = scmp.eq.s32.totalorder %s9, 1
    %p108 = por %p106, %p107
    %p109 = scmp.ne.s32.totalorder %s101, %s104
    %p110 = scmp.eq.s32.totalorder %s9, 0
    %p111 = por %p109, %p110
    %p112 = scmp.ne.s32.totalorder %s101, %s104
    %p113 = scmp.eq.s32.totalorder %s14, 1
    %p114 = por %p112, %p113
    %p115 = scmp.ne.s32.totalorder %s104, %s105
    %p116 = scmp.eq.s32.totalorder %s14, 0
    %p117 = por %p115, %p116
    %p118 = scmp.ne.s32.totalorder %s104, %s105
    %p119 = scmp.eq.s32.totalorder %s15, 1
    %p120 = por %p118, %p119
    %p122 = scmp.ne.s32.totalorder %s105, %s121
    %p123 = scmp.eq.s32.totalorder %s15, 0
    %p124 = por %p122, %p123
    %p125 = scmp.le.s32.totalorder 1, %s9
    %p126 = scmp.lt.s32.totalorder %s9, 3
    %p127 = pnand %p125, %p126
    %p128 = pneg %p127
    // Predicated region
    $region9: #{dis_conv_module_forward.6} parent=5 // pred_check
      _
    $region10: #{dis_conv_module_forward.6} parent=5 // pred_check_branch
      %130 = sbr.rel (%p127) target = $region12
    $region11: #{dis_conv_module_forward.6} parent=5 // pred_region
      %s131 = ssub.s32 %s9, 1
      // Predicated region
      $region13: #{dis_conv_module_forward.6} parent=11 // pred_check
        %p132 = pneg %p68
      $region14: #{dis_conv_module_forward.6} parent=11 // pred_check_branch
        %134 = sbr.rel (%p132) target = $region16
      $region15: #{dis_conv_module_forward.6} parent=11 // pred_region
        _
      $region16: #{dis_conv_module_forward.6} parent=11 // pred_fallthru
        _
      // Predicated region
      $region17: #{dis_conv_module_forward.6} parent=11 // pred_check
        %p135 = pneg %p89
      $region18: #{dis_conv_module_forward.6} parent=11 // pred_check_branch
        %137 = sbr.rel (%p135) target = $region20
      $region19: #{dis_conv_module_forward.6} parent=11 // pred_region
        _
      $region20: #{dis_conv_module_forward.6} parent=11 // pred_fallthru
        _
    $region12: #{dis_conv_module_forward.6} parent=5 // pred_fallthru
      _
    %p138 = scmp.lt.s32.totalorder %s9, 2
    // Predicated region
    $region21: #{dis_conv_module_forward.6} parent=5 // pred_check
      %p139 = pneg %p138
    $region22: #{dis_conv_module_forward.6} parent=5 // pred_check_branch
      %141 = sbr.rel (%p139) target = $region24
    $region23: #{dis_conv_module_forward.6} parent=5 // pred_region
      // Predicated region
      $region25: #{dis_conv_module_forward.6} parent=23 // pred_check
        %p142 = pneg %p41
      $region26: #{dis_conv_module_forward.6} parent=23 // pred_check_branch
        %144 = sbr.rel (%p142) target = $region28
      $region27: #{dis_conv_module_forward.6} parent=23 // pred_region
        %p145 = scmp.lt.s32.totalorder %s16, 1
        %s146 = scalar_select %p145, %s16, 1
        %s147 = smul.addr %s146, 12
        %s148 = smul.addr %s147, 8
        %s149 = scalar_lea.vmem %s0, %s148
      $region28: #{dis_conv_module_forward.6} parent=23 // pred_fallthru
        _
    $region24: #{dis_conv_module_forward.6} parent=5 // pred_fallthru
      _
    %p150 = scmp.le.s32.totalorder 1, %s9
    %p151 = scmp.lt.s32.totalorder %s9, 3
    %p152 = pnand %p150, %p151
    %p153 = pneg %p152
    // Predicated region
    $region29: #{dis_conv_module_forward.6} parent=5 // pred_check
      _
    $region30: #{dis_conv_module_forward.6} parent=5 // pred_check_branch
      %155 = sbr.rel (%p152) target = $region32
    $region31: #{dis_conv_module_forward.6} parent=5 // pred_region
      %s156 = ssub.s32 %s9, 1
      %p157 = scmp.lt.s32.totalorder %s18, 1
      %s158 = scalar_select %p157, %s18, 1
      %s159 = smul.addr %s158, 12
      %s160 = smul.addr %s159, 8
      %s161 = scalar_lea.vmem %s0, %s160
      %p162 = pneg %p47
      %p163 = pneg %p44
      %p164 = pneg %p68
      %p165 = pneg %p65
      %p166 = pneg %p89
      %p167 = pneg %p86
      %p168 = pneg %p117
      %p169 = pneg %p114
      %s170 = smul.u32 4, %s19
      %p171 = scmp.lt.s32.totalorder %s18, 1
      %s172 = scalar_select %p171, %s18, 1
      %p173 = scmp.lt.s32.totalorder %s170, 3
      %s174 = scalar_select %p173, %s170, 3
      %s175 = smul.addr %s172, 4
      %s176 = sadd.s32 %s174, %s175
      %s177 = smul.addr %s176, 8
      %s178 = scalar_lea.vmem %s3, %s177
      %p179 = scmp.lt.s32.totalorder %s18, 1
      %s180 = scalar_select %p179, %s18, 1
      %s181 = smul.addr %s180, 12
      %s182 = smul.addr %s181, 8
      %s183 = scalar_lea.vmem %s0, %s182
      %s184 = smul.u32 4, %s19
      %p185 = scmp.lt.s32.totalorder %s18, 1
      %s186 = scalar_select %p185, %s18, 1
      %p187 = scmp.lt.s32.totalorder %s184, 3
      %s188 = scalar_select %p187, %s184, 3
      %s189 = smul.addr %s186, 4
      %s190 = sadd.s32 %s188, %s189
      %s191 = smul.addr %s190, 8
      %s192 = scalar_lea.vmem %s3, %s191
      %s193 = smul.u32 4, %s19
      %s194 = smul.u32 %s19, 4
      %v195 = vld [vmem:[%s2] sm:$0x1]
      %s196 = smul.u32 %s194, 2
      %s197 = smul.addr %s196, 8
      %s198 = scalar_lea.vmem %s183, %s197
      %v199 = vld [vmem:[%s198] sm:$0xff]
      %v200 = vld [vmem:[%s198 + $0x8] sm:$0xff]
      %v201 = vld [vmem:[%s198 + $0x10] sm:$0xff]
      %v202 = vld [vmem:[%s198 + $0x18] sm:$0xff]
      %v203 = vld [vmem:[%s198 + $0x20] sm:$0xff]
      %v204 = vld [vmem:[%s198 + $0x28] sm:$0xff]
      %v205 = vld [vmem:[%s198 + $0x30] sm:$0xff]
      %v206 = vld [vmem:[%s198 + $0x38] sm:$0xff]
      %v207 = vld [vmem:[%s1] sm:$0xff]
      %v208 = vld [vmem:[%s1 + $0x8] sm:$0xff]
      %v209 = vld [vmem:[%s1 + $0x10] sm:$0xff]
      %v210 = vld [vmem:[%s1 + $0x18] sm:$0xff]
      %v211 = vld [vmem:[%s1 + $0x20] sm:$0xff]
      %v212 = vld [vmem:[%s1 + $0x28] sm:$0xff]
      %v213 = vld [vmem:[%s1 + $0x30] sm:$0xff]
      %v214 = vld [vmem:[%s1 + $0x38] sm:$0xff]
      %v215 = vld [vmem:[%s1 + $0x40] sm:$0xff]
      %v216 = vld [vmem:[%s1 + $0x48] sm:$0xff]
      %v217 = vld [vmem:[%s1 + $0x50] sm:$0xff]
      %v218 = vld [vmem:[%s1 + $0x58] sm:$0xff]
      %v219 = vld [vmem:[%s1 + $0x60] sm:$0xff]
      %v220 = vld [vmem:[%s1 + $0x68] sm:$0xff]
      %v221 = vld [vmem:[%s1 + $0x70] sm:$0xff]
      %v222 = vld [vmem:[%s1 + $0x78] sm:$0xff]
      %v223 = vld [vmem:[%s1 + $0x80] sm:$0xff]
      %v224 = vld [vmem:[%s1 + $0x88] sm:$0xff]
      %v225 = vld [vmem:[%s1 + $0x90] sm:$0xff]
      %v226 = vld [vmem:[%s1 + $0x98] sm:$0xff]
      %v227 = vld [vmem:[%s1 + $0xa0] sm:$0xff]
      %v228 = vld [vmem:[%s1 + $0xa8] sm:$0xff]
      %v229 = vld [vmem:[%s1 + $0xb0] sm:$0xff]
      %v230 = vld [vmem:[%s1 + $0xb8] sm:$0xff]
      %s231 = sadd.s32 %s194, 1
      %s232 = smul.u32 %s231, 2
      %s233 = smul.addr %s232, 8
      %s234 = scalar_lea.vmem %s183, %s233
      %v235 = vld [vmem:[%s234] sm:$0xff]
      %v236 = vld [vmem:[%s234 + $0x8] sm:$0xff]
      %v237 = vld [vmem:[%s234 + $0x10] sm:$0xff]
      %v238 = vld [vmem:[%s234 + $0x18] sm:$0xff]
      %v239 = vld [vmem:[%s234 + $0x20] sm:$0xff]
      %v240 = vld [vmem:[%s234 + $0x28] sm:$0xff]
      %v241 = vld [vmem:[%s234 + $0x30] sm:$0xff]
      %v242 = vld [vmem:[%s234 + $0x38] sm:$0xff]
      %s243 = scalar_lea.vmem %s1, 192
      %v244 = vld [vmem:[%s243] sm:$0xff]
      %v245 = vld [vmem:[%s243 + $0x8] sm:$0xff]
      %v246 = vld [vmem:[%s243 + $0x10] sm:$0xff]
      %v247 = vld [vmem:[%s243 + $0x18] sm:$0xff]
      %v248 = vld [vmem:[%s243 + $0x20] sm:$0xff]
      %v249 = vld [vmem:[%s243 + $0x28] sm:$0xff]
      %v250 = vld [vmem:[%s243 + $0x30] sm:$0xff]
      %v251 = vld [vmem:[%s243 + $0x38] sm:$0xff]
      %v252 = vld [vmem:[%s243 + $0x40] sm:$0xff]
      %v253 = vld [vmem:[%s243 + $0x48] sm:$0xff]
      %v254 = vld [vmem:[%s243 + $0x50] sm:$0xff]
      %v255 = vld [vmem:[%s243 + $0x58] sm:$0xff]
      %v256 = vld [vmem:[%s243 + $0x60] sm:$0xff]
      %v257 = vld [vmem:[%s243 + $0x68] sm:$0xff]
      %v258 = vld [vmem:[%s243 + $0x70] sm:$0xff]
      %v259 = vld [vmem:[%s243 + $0x78] sm:$0xff]
      %v260 = vld [vmem:[%s243 + $0x80] sm:$0xff]
      %v261 = vld [vmem:[%s243 + $0x88] sm:$0xff]
      %v262 = vld [vmem:[%s243 + $0x90] sm:$0xff]
      %v263 = vld [vmem:[%s243 + $0x98] sm:$0xff]
      %v264 = vld [vmem:[%s243 + $0xa0] sm:$0xff]
      %v265 = vld [vmem:[%s243 + $0xa8] sm:$0xff]
      %v266 = vld [vmem:[%s243 + $0xb0] sm:$0xff]
      %v267 = vld [vmem:[%s243 + $0xb8] sm:$0xff]
      %vm268 = vcmask 523264
      %v270 = vsel %vm268, %v236, 0
      %v273 = vsel %vm268, %v238, 0
      %v276 = vsel %vm268, %v240, 0
      %v279 = vsel %vm268, %v242, 0
      %281 = vmatpush.msra.mxu0 %v259
      %282 = vmatpush.msra.mxu0 %v258
      %283 = vmatpush.msra.mxu0 %v257
      %284 = vmatpush.msra.mxu0 %v256
      %285 = vmatpush.msra.mxu0 %v255
      %286 = vmatpush.msra.mxu0 %v254
      %287 = vmatpush.msra.mxu0 %v253
      %288 = vmatpush.msra.mxu0 %v252
      %289 = vmatpush.msra.mxu0 %v251
      %290 = vmatpush.msra.mxu0 %v250
      %291 = vmatpush.msra.mxu0 %v249
      %292 = vmatpush.msra.mxu0 %v248
      %293 = vmatpush.msra.mxu0 %v247
      %294 = vmatpush.msra.mxu0 %v246
      %295 = vmatpush.msra.mxu0 %v245
      %296 = vmatpush.msra.mxu0 %v244
      %297 = vmatmul.f32.gmra.mxu0 %v235
      %v298 = vpop.f32.mrf.mxu0
      %v299 = vadd.f32 0.0, %v298
      %300 = vmatmul.f32.gmra.mxu0 %v237
      %v301 = vpop.f32.mrf.mxu0
      %v302 = vadd.f32 0.0, %v301
      %303 = vmatmul.f32.gmra.mxu0 %v239
      %v304 = vpop.f32.mrf.mxu0
      %v305 = vadd.f32 0.0, %v304
      %306 = vmatmul.f32.gmra.mxu0 %v241
      %v307 = vpop.f32.mrf.mxu0
      %v308 = vadd.f32 0.0, %v307
      %309 = vdwg.mxu0
      %310 = vmatpush.msra.mxu0 0.0
      %311 = vmatpush.msra.mxu0 0.0
      %312 = vmatpush.msra.mxu0 0.0
      %313 = vmatpush.msra.mxu0 0.0
      %314 = vmatpush.msra.mxu0 0.0
      %315 = vmatpush.msra.mxu0 0.0
      %316 = vmatpush.msra.mxu0 0.0
      %317 = vmatpush.msra.mxu0 0.0
      %318 = vmatpush.msra.mxu0 %v267
      %319 = vmatpush.msra.mxu0 %v266
      %320 = vmatpush.msra.mxu0 %v265
      %321 = vmatpush.msra.mxu0 %v264
      %322 = vmatpush.msra.mxu0 %v263
      %323 = vmatpush.msra.mxu0 %v262
      %324 = vmatpush.msra.mxu0 %v261
      %325 = vmatpush.msra.mxu0 %v260
      %326 = vmatmul.f32.gmra.mxu0 %v270
      %v327 = vpop.f32.mrf.mxu0
      %v328 = vadd.f32 %v299, %v327
      %329 = vmatmul.f32.gmra.mxu0 %v273
      %v330 = vpop.f32.mrf.mxu0
      %v331 = vadd.f32 %v302, %v330
      %332 = vmatmul.f32.gmra.mxu0 %v276
      %v333 = vpop.f32.mrf.mxu0
      %v334 = vadd.f32 %v305, %v333
      %335 = vmatmul.f32.gmra.mxu0 %v279
      %v336 = vpop.f32.mrf.mxu0
      %v337 = vadd.f32 %v308, %v336
      %338 = vdwg.mxu0
      %v340 = vsel %vm268, %v200, 0
      %v343 = vsel %vm268, %v202, 0
      %v346 = vsel %vm268, %v204, 0
      %v349 = vsel %vm268, %v206, 0
      %351 = vmatpush.msra.mxu0 %v222
      %352 = vmatpush.msra.mxu0 %v221
      %353 = vmatpush.msra.mxu0 %v220
      %354 = vmatpush.msra.mxu0 %v219
      %355 = vmatpush.msra.mxu0 %v218
      %356 = vmatpush.msra.mxu0 %v217
      %357 = vmatpush.msra.mxu0 %v216
      %358 = vmatpush.msra.mxu0 %v215
      %359 = vmatpush.msra.mxu0 %v214
      %360 = vmatpush.msra.mxu0 %v213
      %361 = vmatpush.msra.mxu0 %v212
      %362 = vmatpush.msra.mxu0 %v211
      %363 = vmatpush.msra.mxu0 %v210
      %364 = vmatpush.msra.mxu0 %v209
      %365 = vmatpush.msra.mxu0 %v208
      %366 = vmatpush.msra.mxu0 %v207
      %367 = vmatmul.f32.gmra.mxu0 %v199
      %v368 = vpop.f32.mrf.mxu0
      %v369 = vadd.f32 %v328, %v368
      %370 = vmatmul.f32.gmra.mxu0 %v201
      %v371 = vpop.f32.mrf.mxu0
      %v372 = vadd.f32 %v331, %v371
      %373 = vmatmul.f32.gmra.mxu0 %v203
      %v374 = vpop.f32.mrf.mxu0
      %v375 = vadd.f32 %v334, %v374
      %376 = vmatmul.f32.gmra.mxu0 %v205
      %v377 = vpop.f32.mrf.mxu0
      %v378 = vadd.f32 %v337, %v377
      %379 = vdwg.mxu0
      %380 = vmatpush.msra.mxu0 0.0
      %381 = vmatpush.msra.mxu0 0.0
      %382 = vmatpush.msra.mxu0 0.0
      %383 = vmatpush.msra.mxu0 0.0
      %384 = vmatpush.msra.mxu0 0.0
      %385 = vmatpush.msra.mxu0 0.0
      %386 = vmatpush.msra.mxu0 0.0
      %387 = vmatpush.msra.mxu0 0.0
      %388 = vmatpush.msra.mxu0 %v230
      %389 = vmatpush.msra.mxu0 %v229
      %390 = vmatpush.msra.mxu0 %v228
      %391 = vmatpush.msra.mxu0 %v227
      %392 = vmatpush.msra.mxu0 %v226
      %393 = vmatpush.msra.mxu0 %v225
      %394 = vmatpush.msra.mxu0 %v224
      %395 = vmatpush.msra.mxu0 %v223
      %396 = vmatmul.f32.gmra.mxu0 %v340
      %v397 = vpop.f32.mrf.mxu0
      %v398 = vadd.f32 %v369, %v397
      %399 = vmatmul.f32.gmra.mxu0 %v343
      %v400 = vpop.f32.mrf.mxu0
      %v401 = vadd.f32 %v372, %v400
      %402 = vmatmul.f32.gmra.mxu0 %v346
      %v403 = vpop.f32.mrf.mxu0
      %v404 = vadd.f32 %v375, %v403
      %405 = vmatmul.f32.gmra.mxu0 %v349
      %v406 = vpop.f32.mrf.mxu0
      %v407 = vadd.f32 %v378, %v406
      %408 = vdwg.mxu0
      %s409 = sadd.s32 %s194, 2
      %s410 = smul.u32 %s409, 2
      %s411 = smul.addr %s410, 8
      %s412 = scalar_lea.vmem %s183, %s411
      %v413 = vld [vmem:[%s412] sm:$0xff]
      %v414 = vld [vmem:[%s412 + $0x8] sm:$0xff]
      %v415 = vld [vmem:[%s412 + $0x10] sm:$0xff]
      %v416 = vld [vmem:[%s412 + $0x18] sm:$0xff]
      %v417 = vld [vmem:[%s412 + $0x20] sm:$0xff]
      %v418 = vld [vmem:[%s412 + $0x28] sm:$0xff]
      %v419 = vld [vmem:[%s412 + $0x30] sm:$0xff]
      %v420 = vld [vmem:[%s412 + $0x38] sm:$0xff]
      %s421 = scalar_lea.vmem %s1, 384
      %v422 = vld [vmem:[%s421] sm:$0xff]
      %v423 = vld [vmem:[%s421 + $0x8] sm:$0xff]
      %v424 = vld [vmem:[%s421 + $0x10] sm:$0xff]
      %v425 = vld [vmem:[%s421 + $0x18] sm:$0xff]
      %v426 = vld [vmem:[%s421 + $0x20] sm:$0xff]
      %v427 = vld [vmem:[%s421 + $0x28] sm:$0xff]
      %v428 = vld [vmem:[%s421 + $0x30] sm:$0xff]
      %v429 = vld [vmem:[%s421 + $0x38] sm:$0xff]
      %v430 = vld [vmem:[%s421 + $0x40] sm:$0xff]
      %v431 = vld [vmem:[%s421 + $0x48] sm:$0xff]
      %v432 = vld [vmem:[%s421 + $0x50] sm:$0xff]
      %v433 = vld [vmem:[%s421 + $0x58] sm:$0xff]
      %v434 = vld [vmem:[%s421 + $0x60] sm:$0xff]
      %v435 = vld [vmem:[%s421 + $0x68] sm:$0xff]
      %v436 = vld [vmem:[%s421 + $0x70] sm:$0xff]
      %v437 = vld [vmem:[%s421 + $0x78] sm:$0xff]
      %v438 = vld [vmem:[%s421 + $0x80] sm:$0xff]
      %v439 = vld [vmem:[%s421 + $0x88] sm:$0xff]
      %v440 = vld [vmem:[%s421 + $0x90] sm:$0xff]
      %v441 = vld [vmem:[%s421 + $0x98] sm:$0xff]
      %v442 = vld [vmem:[%s421 + $0xa0] sm:$0xff]
      %v443 = vld [vmem:[%s421 + $0xa8] sm:$0xff]
      %v444 = vld [vmem:[%s421 + $0xb0] sm:$0xff]
      %v445 = vld [vmem:[%s421 + $0xb8] sm:$0xff]
      %v447 = vsel %vm268, %v414, 0
      %v450 = vsel %vm268, %v416, 0
      %v453 = vsel %vm268, %v418, 0
      %v456 = vsel %vm268, %v420, 0
      %458 = vmatpush.msra.mxu0 %v437
      %459 = vmatpush.msra.mxu0 %v436
      %460 = vmatpush.msra.mxu0 %v435
      %461 = vmatpush.msra.mxu0 %v434
      %462 = vmatpush.msra.mxu0 %v433
      %463 = vmatpush.msra.mxu0 %v432
      %464 = vmatpush.msra.mxu0 %v431
      %465 = vmatpush.msra.mxu0 %v430
      %466 = vmatpush.msra.mxu0 %v429
      %467 = vmatpush.msra.mxu0 %v428
      %468 = vmatpush.msra.mxu0 %v427
      %469 = vmatpush.msra.mxu0 %v426
      %470 = vmatpush.msra.mxu0 %v425
      %471 = vmatpush.msra.mxu0 %v424
      %472 = vmatpush.msra.mxu0 %v423
      %473 = vmatpush.msra.mxu0 %v422
      %474 = vmatmul.f32.gmra.mxu0 %v413
      %v475 = vpop.f32.mrf.mxu0
      %v476 = vadd.f32 0.0, %v475
      %477 = vmatmul.f32.gmra.mxu0 %v415
      %v478 = vpop.f32.mrf.mxu0
      %v479 = vadd.f32 0.0, %v478
      %480 = vmatmul.f32.gmra.mxu0 %v417
      %v481 = vpop.f32.mrf.mxu0
      %v482 = vadd.f32 0.0, %v481
      %483 = vmatmul.f32.gmra.mxu0 %v419
      %v484 = vpop.f32.mrf.mxu0
      %v485 = vadd.f32 0.0, %v484
      %486 = vdwg.mxu0
      %487 = vmatpush.msra.mxu0 0.0
      %488 = vmatpush.msra.mxu0 0.0
      %489 = vmatpush.msra.mxu0 0.0
      %490 = vmatpush.msra.mxu0 0.0
      %491 = vmatpush.msra.mxu0 0.0
      %492 = vmatpush.msra.mxu0 0.0
      %493 = vmatpush.msra.mxu0 0.0
      %494 = vmatpush.msra.mxu0 0.0
      %495 = vmatpush.msra.mxu0 %v445
      %496 = vmatpush.msra.mxu0 %v444
      %497 = vmatpush.msra.mxu0 %v443
      %498 = vmatpush.msra.mxu0 %v442
      %499 = vmatpush.msra.mxu0 %v441
      %500 = vmatpush.msra.mxu0 %v440
      %501 = vmatpush.msra.mxu0 %v439
      %502 = vmatpush.msra.mxu0 %v438
      %503 = vmatmul.f32.gmra.mxu0 %v447
      %v504 = vpop.f32.mrf.mxu0
      %v505 = vadd.f32 %v476, %v504
      %506 = vmatmul.f32.gmra.mxu0 %v450
      %v507 = vpop.f32.mrf.mxu0
      %v508 = vadd.f32 %v479, %v507
      %509 = vmatmul.f32.gmra.mxu0 %v453
      %v510 = vpop.f32.mrf.mxu0
      %v511 = vadd.f32 %v482, %v510
      %512 = vmatmul.f32.gmra.mxu0 %v456
      %v513 = vpop.f32.mrf.mxu0
      %v514 = vadd.f32 %v485, %v513
      %515 = vdwg.mxu0
      %v516 = vadd.f32 %v398, %v505
      %v517 = vadd.f32 %v401, %v508
      %v518 = vadd.f32 %v404, %v511
      %v519 = vadd.f32 %v407, %v514
      %v521 = vperm.slane %v195, 0
      %v523 = vadd.f32 %v516, %v521
      %v524 = vadd.f32 %v517, %v521
      %v525 = vadd.f32 %v518, %v521
      %v526 = vadd.f32 %v519, %v521
      %vm527 = vcmp.gt.f32.partialorder %v523, 0.0
      %vm528 = vcmp.gt.f32.partialorder %v524, 0.0
      %vm529 = vcmp.gt.f32.partialorder %v525, 0.0
      %vm530 = vcmp.gt.f32.partialorder %v526, 0.0
      %v531 = vmul.f32 %v523, 0.2
      %v532 = vmul.f32 %v524, 0.2
      %v533 = vmul.f32 %v525, 0.2
      %v534 = vmul.f32 %v526, 0.2
      %v535 = vsel %vm527, %v523, %v531
      %v536 = vsel %vm528, %v524, %v532
      %v537 = vsel %vm529, %v525, %v533
      %v538 = vsel %vm530, %v526, %v534
      %539 = vst [vmem:[%s192] sm:$0xff] %v535
      %540 = vst [vmem:[%s192 + $0x8] sm:$0xff] %v536
      %541 = vst [vmem:[%s192 + $0x10] sm:$0xff] %v537
      %542 = vst [vmem:[%s192 + $0x18] sm:$0xff] %v538
      %s543 = smul.u32 4, %s19
      %p544 = scmp.lt.s32.totalorder %s18, 1
      %s545 = scalar_select %p544, %s18, 1
      %p546 = scmp.lt.s32.totalorder %s543, 3
      %s547 = scalar_select %p546, %s543, 3
      %s548 = smul.addr %s545, 4
      %s549 = sadd.s32 %s547, %s548
      %s550 = smul.addr %s549, 8
      %s551 = scalar_lea.vmem %s3, %s550
      // Predicated region
      $region33: #{dis_conv_module_forward.6} parent=31 // pred_check
        %p552 = pneg %p114
      $region34: #{dis_conv_module_forward.6} parent=31 // pred_check_branch
        %554 = sbr.rel (%p552) target = $region36
      $region35: #{dis_conv_module_forward.6} parent=31 // pred_region
        %s555 = smul.u32 4, %s19
      $region36: #{dis_conv_module_forward.6} parent=31 // pred_fallthru
        _
    $region32: #{dis_conv_module_forward.6} parent=5 // pred_fallthru
      _
    %p556 = scmp.le.s32.totalorder 2, %s9
    // Predicated region
    $region37: #{dis_conv_module_forward.6} parent=5 // pred_check
      %p557 = pneg %p556
    $region38: #{dis_conv_module_forward.6} parent=5 // pred_check_branch
      %559 = sbr.rel (%p557) target = $region40
    $region39: #{dis_conv_module_forward.6} parent=5 // pred_region
      %s560 = ssub.s32 %s9, 2
      // Predicated region
      $region41: #{dis_conv_module_forward.6} parent=39 // pred_check
        %p561 = pneg %p120
      $region42: #{dis_conv_module_forward.6} parent=39 // pred_check_branch
        %563 = sbr.rel (%p561) target = $region44
      $region43: #{dis_conv_module_forward.6} parent=39 // pred_region
        %s564 = smul.u32 4, %s21
        %p565 = scmp.lt.s32.totalorder %s20, 1
        %s566 = scalar_select %p565, %s20, 1
        %p567 = scmp.lt.s32.totalorder %s564, 3
        %s568 = scalar_select %p567, %s564, 3
        %s569 = smul.addr %s566, 4
        %s570 = sadd.s32 %s568, %s569
        %s571 = smul.addr %s570, 8
        %s572 = scalar_lea.vmem %s3, %s571
      $region44: #{dis_conv_module_forward.6} parent=39 // pred_fallthru
        _
    $region40: #{dis_conv_module_forward.6} parent=5 // pred_fallthru
      _
  $region6: #{dis_conv_module_forward.6} parent=0 // loop_footer
    %s13 = sadd.s32 1, %s9
  $region7: #{dis_conv_module_forward.6} parent=0 // loop_footer_branch
    %8 = sbr.rel target = $region3
  $region8: #{dis_conv_module_forward.6} parent=0 // loop_exit
    _

// kernel: dis_conv_module_forward.7
$region0: #{dis_conv_module_forward.7}
  #allocation0 [shape = 'u32[]', space=smem, size = 0x4, offset = 0x4, fixed_abs, tag = 'smem constant byte address 0x4 - core index']
  #allocation1 [shape = 'u32[72,128]{1,0:T(1,128)}', space=vmem, size = 0x9000, scoped, tag = 'internal scratch']
  %s0 = inlined_call_operand.vmem [shape: f32[2,4,8,384], index: 0, kind: input, shape index: {}]
  %s1 = inlined_call_operand.vmem [shape: f32[3,384,128], index: 1, kind: input, shape index: {}]
  %s2 = inlined_call_operand.vmem [shape: f32[1,128], index: 2, kind: input, shape index: {}]
  %s3 = inlined_call_operand.vmem [shape: f32[2,16,128], index: 3, kind: output, shape index: {}]
  %s4 = sld [smem:[#allocation0]]
  $region45: #{dis_conv_module_forward.7} parent=0
    _
  %s6 = ssub.s32 1, %s4
  %s7 = scalar_select 0, %s6, %s4
  loop: start=0, step=1, limit=4
  $region2: #{dis_conv_module_forward.7} parent=0 // loop_pre_header
    _
  $region3: #{dis_conv_module_forward.7} parent=0 // loop_header
    %s9 = sphi 0, %s13
    %p10 = scmp.ge.s32.totalorder %s9, 4
    %s16 = sphi 0, %s28
    %s17 = sphi 0, %s24
    %s18 = sphi 0, %s16
    %s19 = sphi 0, %s17
    %s20 = sphi 0, %s18
    %s21 = sphi 0, %s19
    %s31 = sphi 0, %s33
    %s34 = sphi 0, %s31
    %s35 = sphi 0, %s34
    %s51 = sphi 0, %s35
    %s55 = sphi 0, %s55
    %s57 = sphi 0, %s55
    %s58 = sphi 0, %s57
    %s72 = sphi 0, %s58
    %s76 = sphi 0, %s76
    %s78 = sphi 0, %s76
    %s79 = sphi 0, %s78
    %s93 = sphi 0, %s79
    %s101 = sphi 0, %s103
    %s104 = sphi 0, %s101
    %s105 = sphi 0, %s104
    %s121 = sphi 0, %s105
  $region4: #{dis_conv_module_forward.7} parent=0 // loop_header_branch
    %12 = sbr.rel (%p10) target = $region8
  $region5: #{dis_conv_module_forward.7} parent=0 // loop_body
    %s14 = ssub.s32 %s9, 1
    %s15 = ssub.s32 %s9, 2
    %s22 = sadd.s32 1, %s17
    %p23 = scmp.ge.s32.totalorder %s22, 1
    %s24 = scalar_select %p23, 0, %s22
    %s25 = sadd.s32 1, %s16
    %s26 = scalar_select %p23, %s25, %s16
    %p27 = scmp.ge.s32.totalorder %s26, 2
    %s28 = scalar_select %p27, 0, %s26
    %s29 = ssub.s32 %s16, %s28
    %p30 = scmp.eq.s32.totalorder %s29, 0
    %s32 = sadd.s32 %s31, 1
    %s33 = scalar_select %p30, %s31, %s32
    %p36 = pneg %p30
    %p37 = scmp.eq.s32.totalorder %s9, 1
    %p38 = por %p36, %p37
    %p39 = scmp.ne.s32.totalorder %s31, %s34
    %p40 = scmp.eq.s32.totalorder %s9, 0
    %p41 = por %p39, %p40
    %p42 = scmp.ne.s32.totalorder %s31, %s34
    %p43 = scmp.eq.s32.totalorder %s14, 1
    %p44 = por %p42, %p43
    %p45 = scmp.ne.s32.totalorder %s34, %s35
    %p46 = scmp.eq.s32.totalorder %s14, 0
    %p47 = por %p45, %p46
    %p48 = scmp.ne.s32.totalorder %s34, %s35
    %p49 = scmp.eq.s32.totalorder %s15, 1
    %p50 = por %p48, %p49
    %p52 = scmp.ne.s32.totalorder %s35, %s51
    %p53 = scmp.eq.s32.totalorder %s15, 0
    %p54 = por %p52, %p53
    %s56 = sadd.s32 %s55, 1
    %p59 = scmp.eq.s32.totalorder %s9, 1
    %p60 = scmp.ne.s32.totalorder %s55, %s57
    %p61 = scmp.eq.s32.totalorder %s9, 0
    %p62 = por %p60, %p61
    %p63 = scmp.ne.s32.totalorder %s55, %s57
    %p64 = scmp.eq.s32.totalorder %s14, 1
    %p65 = por %p63, %p64
    %p66 = scmp.ne.s32.totalorder %s57, %s58
    %p67 = scmp.eq.s32.totalorder %s14, 0
    %p68 = por %p66, %p67
    %p69 = scmp.ne.s32.totalorder %s57, %s58
    %p70 = scmp.eq.s32.totalorder %s15, 1
    %p71 = por %p69, %p70
    %p73 = scmp.ne.s32.totalorder %s58, %s72
    %p74 = scmp.eq.s32.totalorder %s15, 0
    %p75 = por %p73, %p74
    %s77 = sadd.s32 %s76, 1
    %p80 = scmp.eq.s32.totalorder %s9, 1
    %p81 = scmp.ne.s32.totalorder %s76, %s78
    %p82 = scmp.eq.s32.totalorder %s9, 0
    %p83 = por %p81, %p82
    %p84 = scmp.ne.s32.totalorder %s76, %s78
    %p85 = scmp.eq.s32.totalorder %s14, 1
    %p86 = por %p84, %p85
    %p87 = scmp.ne.s32.totalorder %s78, %s79
    %p88 = scmp.eq.s32.totalorder %s14, 0
    %p89 = por %p87, %p88
    %p90 = scmp.ne.s32.totalorder %s78, %s79
    %p91 = scmp.eq.s32.totalorder %s15, 1
    %p92 = por %p90, %p91
    %p94 = scmp.ne.s32.totalorder %s79, %s93
    %p95 = scmp.eq.s32.totalorder %s15, 0
    %p96 = por %p94, %p95
    %s97 = ssub.s32 %s16, %s28
    %s98 = ssub.s32 %s17, %s24
    %s99 = sor.u32 %s97, %s98
    %p100 = scmp.eq.s32.totalorder %s99, 0
    %s102 = sadd.s32 %s101, 1
    %s103 = scalar_select %p100, %s101, %s102
    %p106 = pneg %p100
    %p107 = scmp.eq.s32.totalorder %s9, 1
    %p108 = por %p106, %p107
    %p109 = scmp.ne.s32.totalorder %s101, %s104
    %p110 = scmp.eq.s32.totalorder %s9, 0
    %p111 = por %p109, %p110
    %p112 = scmp.ne.s32.totalorder %s101, %s104
    %p113 = scmp.eq.s32.totalorder %s14, 1
    %p114 = por %p112, %p113
    %p115 = scmp.ne.s32.totalorder %s104, %s105
    %p116 = scmp.eq.s32.totalorder %s14, 0
    %p117 = por %p115, %p116
    %p118 = scmp.ne.s32.totalorder %s104, %s105
    %p119 = scmp.eq.s32.totalorder %s15, 1
    %p120 = por %p118, %p119
    %p122 = scmp.ne.s32.totalorder %s105, %s121
    %p123 = scmp.eq.s32.totalorder %s15, 0
    %p124 = por %p122, %p123
    %p125 = scmp.le.s32.totalorder 1, %s9
    %p126 = scmp.lt.s32.totalorder %s9, 3
    %p127 = pnand %p125, %p126
    %p128 = pneg %p127
    // Predicated region
    $region9: #{dis_conv_module_forward.7} parent=5 // pred_check
      _
    $region10: #{dis_conv_module_forward.7} parent=5 // pred_check_branch
      %130 = sbr.rel (%p127) target = $region12
    $region11: #{dis_conv_module_forward.7} parent=5 // pred_region
      %s131 = ssub.s32 %s9, 1
      // Predicated region
      $region13: #{dis_conv_module_forward.7} parent=11 // pred_check
        %p132 = pneg %p68
      $region14: #{dis_conv_module_forward.7} parent=11 // pred_check_branch
        %134 = sbr.rel (%p132) target = $region16
      $region15: #{dis_conv_module_forward.7} parent=11 // pred_region
        _
      $region16: #{dis_conv_module_forward.7} parent=11 // pred_fallthru
        _
      // Predicated region
      $region17: #{dis_conv_module_forward.7} parent=11 // pred_check
        %p135 = pneg %p89
      $region18: #{dis_conv_module_forward.7} parent=11 // pred_check_branch
        %137 = sbr.rel (%p135) target = $region20
      $region19: #{dis_conv_module_forward.7} parent=11 // pred_region
        _
      $region20: #{dis_conv_module_forward.7} parent=11 // pred_fallthru
        _
    $region12: #{dis_conv_module_forward.7} parent=5 // pred_fallthru
      _
    %p138 = scmp.lt.s32.totalorder %s9, 2
    // Predicated region
    $region21: #{dis_conv_module_forward.7} parent=5 // pred_check
      %p139 = pneg %p138
    $region22: #{dis_conv_module_forward.7} parent=5 // pred_check_branch
      %141 = sbr.rel (%p139) target = $region24
    $region23: #{dis_conv_module_forward.7} parent=5 // pred_region
      // Predicated region
      $region25: #{dis_conv_module_forward.7} parent=23 // pred_check
        %p142 = pneg %p41
      $region26: #{dis_conv_module_forward.7} parent=23 // pred_check_branch
        %144 = sbr.rel (%p142) target = $region28
      $region27: #{dis_conv_module_forward.7} parent=23 // pred_region
        %p145 = scmp.lt.s32.totalorder %s16, 1
        %s146 = scalar_select %p145, %s16, 1
        %s147 = smul.addr %s146, 12
        %s148 = smul.addr %s147, 8
        %s149 = scalar_lea.vmem %s0, %s148
      $region28: #{dis_conv_module_forward.7} parent=23 // pred_fallthru
        _
    $region24: #{dis_conv_module_forward.7} parent=5 // pred_fallthru
      _
    %p150 = scmp.le.s32.totalorder 1, %s9
    %p151 = scmp.lt.s32.totalorder %s9, 3
    %p152 = pnand %p150, %p151
    %p153 = pneg %p152
    // Predicated region
    $region29: #{dis_conv_module_forward.7} parent=5 // pred_check
      _
    $region30: #{dis_conv_module_forward.7} parent=5 // pred_check_branch
      %155 = sbr.rel (%p152) target = $region32
    $region31: #{dis_conv_module_forward.7} parent=5 // pred_region
      %s156 = ssub.s32 %s9, 1
      %p157 = scmp.lt.s32.totalorder %s18, 1
      %s158 = scalar_select %p157, %s18, 1
      %s159 = smul.addr %s158, 12
      %s160 = smul.addr %s159, 8
      %s161 = scalar_lea.vmem %s0, %s160
      %p162 = pneg %p47
      %p163 = pneg %p44
      %p164 = pneg %p68
      %p165 = pneg %p65
      %p166 = pneg %p89
      %p167 = pneg %p86
      %p168 = pneg %p117
      %p169 = pneg %p114
      %s170 = smul.u32 2, %s19
      %p171 = scmp.lt.s32.totalorder %s18, 1
      %s172 = scalar_select %p171, %s18, 1
      %p173 = scmp.lt.s32.totalorder %s170, 1
      %s174 = scalar_select %p173, %s170, 1
      %s175 = smul.addr %s172, 2
      %s176 = sadd.s32 %s174, %s175
      %s177 = smul.addr %s176, 8
      %s178 = scalar_lea.vmem %s3, %s177
      %p179 = scmp.lt.s32.totalorder %s18, 1
      %s180 = scalar_select %p179, %s18, 1
      %s181 = smul.addr %s180, 12
      %s182 = smul.addr %s181, 8
      %s183 = scalar_lea.vmem %s0, %s182
      %s184 = smul.u32 2, %s19
      %p185 = scmp.lt.s32.totalorder %s18, 1
      %s186 = scalar_select %p185, %s18, 1
      %p187 = scmp.lt.s32.totalorder %s184, 1
      %s188 = scalar_select %p187, %s184, 1
      %s189 = smul.addr %s186, 2
      %s190 = sadd.s32 %s188, %s189
      %s191 = smul.addr %s190, 8
      %s192 = scalar_lea.vmem %s3, %s191
      %s193 = smul.u32 2, %s19
      %s194 = smul.u32 %s19, 2
      %v195 = vld [vmem:[%s2] sm:$0x1]
      %s196 = smul.u32 %s194, 3
      %s197 = smul.addr %s196, 8
      %s198 = scalar_lea.vmem %s183, %s197
      %v199 = vld [vmem:[%s198] sm:$0xff]
      %v200 = vld [vmem:[%s198 + $0x8] sm:$0xff]
      %v201 = vld [vmem:[%s198 + $0x10] sm:$0xff]
      %v202 = vld [vmem:[%s198 + $0x18] sm:$0xff]
      %v203 = vld [vmem:[%s198 + $0x20] sm:$0xff]
      %v204 = vld [vmem:[%s198 + $0x28] sm:$0xff]
      %v205 = vld [vmem:[%s1] sm:$0xff]
      %v206 = vld [vmem:[%s1 + $0x8] sm:$0xff]
      %v207 = vld [vmem:[%s1 + $0x10] sm:$0xff]
      %v208 = vld [vmem:[%s1 + $0x18] sm:$0xff]
      %v209 = vld [vmem:[%s1 + $0x20] sm:$0xff]
      %v210 = vld [vmem:[%s1 + $0x28] sm:$0xff]
      %v211 = vld [vmem:[%s1 + $0x30] sm:$0xff]
      %v212 = vld [vmem:[%s1 + $0x38] sm:$0xff]
      %v213 = vld [vmem:[%s1 + $0x40] sm:$0xff]
      %v214 = vld [vmem:[%s1 + $0x48] sm:$0xff]
      %v215 = vld [vmem:[%s1 + $0x50] sm:$0xff]
      %v216 = vld [vmem:[%s1 + $0x58] sm:$0xff]
      %v217 = vld [vmem:[%s1 + $0x60] sm:$0xff]
      %v218 = vld [vmem:[%s1 + $0x68] sm:$0xff]
      %v219 = vld [vmem:[%s1 + $0x70] sm:$0xff]
      %v220 = vld [vmem:[%s1 + $0x78] sm:$0xff]
      %v221 = vld [vmem:[%s1 + $0x80] sm:$0xff]
      %v222 = vld [vmem:[%s1 + $0x88] sm:$0xff]
      %v223 = vld [vmem:[%s1 + $0x90] sm:$0xff]
      %v224 = vld [vmem:[%s1 + $0x98] sm:$0xff]
      %v225 = vld [vmem:[%s1 + $0xa0] sm:$0xff]
      %v226 = vld [vmem:[%s1 + $0xa8] sm:$0xff]
      %v227 = vld [vmem:[%s1 + $0xb0] sm:$0xff]
      %v228 = vld [vmem:[%s1 + $0xb8] sm:$0xff]
      %v229 = vld [vmem:[%s1 + $0xc0] sm:$0xff]
      %v230 = vld [vmem:[%s1 + $0xc8] sm:$0xff]
      %v231 = vld [vmem:[%s1 + $0xd0] sm:$0xff]
      %v232 = vld [vmem:[%s1 + $0xd8] sm:$0xff]
      %v233 = vld [vmem:[%s1 + $0xe0] sm:$0xff]
      %v234 = vld [vmem:[%s1 + $0xe8] sm:$0xff]
      %v235 = vld [vmem:[%s1 + $0xf0] sm:$0xff]
      %v236 = vld [vmem:[%s1 + $0xf8] sm:$0xff]
      %v237 = vld [vmem:[%s1 + $0x100] sm:$0xff]
      %v238 = vld [vmem:[%s1 + $0x108] sm:$0xff]
      %v239 = vld [vmem:[%s1 + $0x110] sm:$0xff]
      %v240 = vld [vmem:[%s1 + $0x118] sm:$0xff]
      %v241 = vld [vmem:[%s1 + $0x120] sm:$0xff]
      %v242 = vld [vmem:[%s1 + $0x128] sm:$0xff]
      %v243 = vld [vmem:[%s1 + $0x130] sm:$0xff]
      %v244 = vld [vmem:[%s1 + $0x138] sm:$0xff]
      %v245 = vld [vmem:[%s1 + $0x140] sm:$0xff]
      %v246 = vld [vmem:[%s1 + $0x148] sm:$0xff]
      %v247 = vld [vmem:[%s1 + $0x150] sm:$0xff]
      %v248 = vld [vmem:[%s1 + $0x158] sm:$0xff]
      %v249 = vld [vmem:[%s1 + $0x160] sm:$0xff]
      %v250 = vld [vmem:[%s1 + $0x168] sm:$0xff]
      %v251 = vld [vmem:[%s1 + $0x170] sm:$0xff]
      %v252 = vld [vmem:[%s1 + $0x178] sm:$0xff]
      %s253 = sadd.s32 %s194, 1
      %s254 = smul.u32 %s253, 3
      %s255 = smul.addr %s254, 8
      %s256 = scalar_lea.vmem %s183, %s255
      %v257 = vld [vmem:[%s256] sm:$0xff]
      %v258 = vld [vmem:[%s256 + $0x8] sm:$0xff]
      %v259 = vld [vmem:[%s256 + $0x10] sm:$0xff]
      %v260 = vld [vmem:[%s256 + $0x18] sm:$0xff]
      %v261 = vld [vmem:[%s256 + $0x20] sm:$0xff]
      %v262 = vld [vmem:[%s256 + $0x28] sm:$0xff]
      %s263 = scalar_lea.vmem %s1, 384
      %v264 = vld [vmem:[%s263] sm:$0xff]
      %v265 = vld [vmem:[%s263 + $0x8] sm:$0xff]
      %v266 = vld [vmem:[%s263 + $0x10] sm:$0xff]
      %v267 = vld [vmem:[%s263 + $0x18] sm:$0xff]
      %v268 = vld [vmem:[%s263 + $0x20] sm:$0xff]
      %v269 = vld [vmem:[%s263 + $0x28] sm:$0xff]
      %v270 = vld [vmem:[%s263 + $0x30] sm:$0xff]
      %v271 = vld [vmem:[%s263 + $0x38] sm:$0xff]
      %v272 = vld [vmem:[%s263 + $0x40] sm:$0xff]
      %v273 = vld [vmem:[%s263 + $0x48] sm:$0xff]
      %v274 = vld [vmem:[%s263 + $0x50] sm:$0xff]
      %v275 = vld [vmem:[%s263 + $0x58] sm:$0xff]
      %v276 = vld [vmem:[%s263 + $0x60] sm:$0xff]
      %v277 = vld [vmem:[%s263 + $0x68] sm:$0xff]
      %v278 = vld [vmem:[%s263 + $0x70] sm:$0xff]
      %v279 = vld [vmem:[%s263 + $0x78] sm:$0xff]
      %v280 = vld [vmem:[%s263 + $0x80] sm:$0xff]
      %v281 = vld [vmem:[%s263 + $0x88] sm:$0xff]
      %v282 = vld [vmem:[%s263 + $0x90] sm:$0xff]
      %v283 = vld [vmem:[%s263 + $0x98] sm:$0xff]
      %v284 = vld [vmem:[%s263 + $0xa0] sm:$0xff]
      %v285 = vld [vmem:[%s263 + $0xa8] sm:$0xff]
      %v286 = vld [vmem:[%s263 + $0xb0] sm:$0xff]
      %v287 = vld [vmem:[%s263 + $0xb8] sm:$0xff]
      %v288 = vld [vmem:[%s263 + $0xc0] sm:$0xff]
      %v289 = vld [vmem:[%s263 + $0xc8] sm:$0xff]
      %v290 = vld [vmem:[%s263 + $0xd0] sm:$0xff]
      %v291 = vld [vmem:[%s263 + $0xd8] sm:$0xff]
      %v292 = vld [vmem:[%s263 + $0xe0] sm:$0xff]
      %v293 = vld [vmem:[%s263 + $0xe8] sm:$0xff]
      %v294 = vld [vmem:[%s263 + $0xf0] sm:$0xff]
      %v295 = vld [vmem:[%s263 + $0xf8] sm:$0xff]
      %v296 = vld [vmem:[%s263 + $0x100] sm:$0xff]
      %v297 = vld [vmem:[%s263 + $0x108] sm:$0xff]
      %v298 = vld [vmem:[%s263 + $0x110] sm:$0xff]
      %v299 = vld [vmem:[%s263 + $0x118] sm:$0xff]
      %v300 = vld [vmem:[%s263 + $0x120] sm:$0xff]
      %v301 = vld [vmem:[%s263 + $0x128] sm:$0xff]
      %v302 = vld [vmem:[%s263 + $0x130] sm:$0xff]
      %v303 = vld [vmem:[%s263 + $0x138] sm:$0xff]
      %v304 = vld [vmem:[%s263 + $0x140] sm:$0xff]
      %v305 = vld [vmem:[%s263 + $0x148] sm:$0xff]
      %v306 = vld [vmem:[%s263 + $0x150] sm:$0xff]
      %v307 = vld [vmem:[%s263 + $0x158] sm:$0xff]
      %v308 = vld [vmem:[%s263 + $0x160] sm:$0xff]
      %v309 = vld [vmem:[%s263 + $0x168] sm:$0xff]
      %v310 = vld [vmem:[%s263 + $0x170] sm:$0xff]
      %v311 = vld [vmem:[%s263 + $0x178] sm:$0xff]
      %312 = vmatpush.msra.mxu0 %v279
      %313 = vmatpush.msra.mxu0 %v278
      %314 = vmatpush.msra.mxu0 %v277
      %315 = vmatpush.msra.mxu0 %v276
      %316 = vmatpush.msra.mxu0 %v275
      %317 = vmatpush.msra.mxu0 %v274
      %318 = vmatpush.msra.mxu0 %v273
      %319 = vmatpush.msra.mxu0 %v272
      %320 = vmatpush.msra.mxu0 %v271
      %321 = vmatpush.msra.mxu0 %v270
      %322 = vmatpush.msra.mxu0 %v269
      %323 = vmatpush.msra.mxu0 %v268
      %324 = vmatpush.msra.mxu0 %v267
      %325 = vmatpush.msra.mxu0 %v266
      %326 = vmatpush.msra.mxu0 %v265
      %327 = vmatpush.msra.mxu0 %v264
      %328 = vmatmul.f32.gmra.mxu0 %v257
      %v329 = vpop.f32.mrf.mxu0
      %v330 = vadd.f32 0.0, %v329
      %331 = vmatmul.f32.gmra.mxu0 %v260
      %v332 = vpop.f32.mrf.mxu0
      %v333 = vadd.f32 0.0, %v332
      %334 = vdwg.mxu0
      %335 = vmatpush.msra.mxu0 %v295
      %336 = vmatpush.msra.mxu0 %v294
      %337 = vmatpush.msra.mxu0 %v293
      %338 = vmatpush.msra.mxu0 %v292
      %339 = vmatpush.msra.mxu0 %v291
      %340 = vmatpush.msra.mxu0 %v290
      %341 = vmatpush.msra.mxu0 %v289
      %342 = vmatpush.msra.mxu0 %v288
      %343 = vmatpush.msra.mxu0 %v287
      %344 = vmatpush.msra.mxu0 %v286
      %345 = vmatpush.msra.mxu0 %v285
      %346 = vmatpush.msra.mxu0 %v284
      %347 = vmatpush.msra.mxu0 %v283
      %348 = vmatpush.msra.mxu0 %v282
      %349 = vmatpush.msra.mxu0 %v281
      %350 = vmatpush.msra.mxu0 %v280
      %351 = vmatmul.f32.gmra.mxu0 %v258
      %v352 = vpop.f32.mrf.mxu0
      %v353 = vadd.f32 %v330, %v352
      %354 = vmatmul.f32.gmra.mxu0 %v261
      %v355 = vpop.f32.mrf.mxu0
      %v356 = vadd.f32 %v333, %v355
      %357 = vdwg.mxu0
      %358 = vmatpush.msra.mxu0 %v311
      %359 = vmatpush.msra.mxu0 %v310
      %360 = vmatpush.msra.mxu0 %v309
      %361 = vmatpush.msra.mxu0 %v308
      %362 = vmatpush.msra.mxu0 %v307
      %363 = vmatpush.msra.mxu0 %v306
      %364 = vmatpush.msra.mxu0 %v305
      %365 = vmatpush.msra.mxu0 %v304
      %366 = vmatpush.msra.mxu0 %v303
      %367 = vmatpush.msra.mxu0 %v302
      %368 = vmatpush.msra.mxu0 %v301
      %369 = vmatpush.msra.mxu0 %v300
      %370 = vmatpush.msra.mxu0 %v299
      %371 = vmatpush.msra.mxu0 %v298
      %372 = vmatpush.msra.mxu0 %v297
      %373 = vmatpush.msra.mxu0 %v296
      %374 = vmatmul.f32.gmra.mxu0 %v259
      %v375 = vpop.f32.mrf.mxu0
      %v376 = vadd.f32 %v353, %v375
      %377 = vmatmul.f32.gmra.mxu0 %v262
      %v378 = vpop.f32.mrf.mxu0
      %v379 = vadd.f32 %v356, %v378
      %380 = vdwg.mxu0
      %381 = vmatpush.msra.mxu0 %v220
      %382 = vmatpush.msra.mxu0 %v219
      %383 = vmatpush.msra.mxu0 %v218
      %384 = vmatpush.msra.mxu0 %v217
      %385 = vmatpush.msra.mxu0 %v216
      %386 = vmatpush.msra.mxu0 %v215
      %387 = vmatpush.msra.mxu0 %v214
      %388 = vmatpush.msra.mxu0 %v213
      %389 = vmatpush.msra.mxu0 %v212
      %390 = vmatpush.msra.mxu0 %v211
      %391 = vmatpush.msra.mxu0 %v210
      %392 = vmatpush.msra.mxu0 %v209
      %393 = vmatpush.msra.mxu0 %v208
      %394 = vmatpush.msra.mxu0 %v207
      %395 = vmatpush.msra.mxu0 %v206
      %396 = vmatpush.msra.mxu0 %v205
      %397 = vmatmul.f32.gmra.mxu0 %v199
      %v398 = vpop.f32.mrf.mxu0
      %v399 = vadd.f32 %v376, %v398
      %400 = vmatmul.f32.gmra.mxu0 %v202
      %v401 = vpop.f32.mrf.mxu0
      %v402 = vadd.f32 %v379, %v401
      %403 = vdwg.mxu0
      %404 = vmatpush.msra.mxu0 %v236
      %405 = vmatpush.msra.mxu0 %v235
      %406 = vmatpush.msra.mxu0 %v234
      %407 = vmatpush.msra.mxu0 %v233
      %408 = vmatpush.msra.mxu0 %v232
      %409 = vmatpush.msra.mxu0 %v231
      %410 = vmatpush.msra.mxu0 %v230
      %411 = vmatpush.msra.mxu0 %v229
      %412 = vmatpush.msra.mxu0 %v228
      %413 = vmatpush.msra.mxu0 %v227
      %414 = vmatpush.msra.mxu0 %v226
      %415 = vmatpush.msra.mxu0 %v225
      %416 = vmatpush.msra.mxu0 %v224
      %417 = vmatpush.msra.mxu0 %v223
      %418 = vmatpush.msra.mxu0 %v222
      %419 = vmatpush.msra.mxu0 %v221
      %420 = vmatmul.f32.gmra.mxu0 %v200
      %v421 = vpop.f32.mrf.mxu0
      %v422 = vadd.f32 %v399, %v421
      %423 = vmatmul.f32.gmra.mxu0 %v203
      %v424 = vpop.f32.mrf.mxu0
      %v425 = vadd.f32 %v402, %v424
      %426 = vdwg.mxu0
      %427 = vmatpush.msra.mxu0 %v252
      %428 = vmatpush.msra.mxu0 %v251
      %429 = vmatpush.msra.mxu0 %v250
      %430 = vmatpush.msra.mxu0 %v249
      %431 = vmatpush.msra.mxu0 %v248
      %432 = vmatpush.msra.mxu0 %v247
      %433 = vmatpush.msra.mxu0 %v246
      %434 = vmatpush.msra.mxu0 %v245
      %435 = vmatpush.msra.mxu0 %v244
      %436 = vmatpush.msra.mxu0 %v243
      %437 = vmatpush.msra.mxu0 %v242
      %438 = vmatpush.msra.mxu0 %v241
      %439 = vmatpush.msra.mxu0 %v240
      %440 = vmatpush.msra.mxu0 %v239
      %441 = vmatpush.msra.mxu0 %v238
      %442 = vmatpush.msra.mxu0 %v237
      %443 = vmatmul.f32.gmra.mxu0 %v201
      %v444 = vpop.f32.mrf.mxu0
      %v445 = vadd.f32 %v422, %v444
      %446 = vmatmul.f32.gmra.mxu0 %v204
      %v447 = vpop.f32.mrf.mxu0
      %v448 = vadd.f32 %v425, %v447
      %449 = vdwg.mxu0
      %s450 = sadd.s32 %s194, 2
      %s451 = smul.u32 %s450, 3
      %s452 = smul.addr %s451, 8
      %s453 = scalar_lea.vmem %s183, %s452
      %v454 = vld [vmem:[%s453] sm:$0xff]
      %v455 = vld [vmem:[%s453 + $0x8] sm:$0xff]
      %v456 = vld [vmem:[%s453 + $0x10] sm:$0xff]
      %v457 = vld [vmem:[%s453 + $0x18] sm:$0xff]
      %v458 = vld [vmem:[%s453 + $0x20] sm:$0xff]
      %v459 = vld [vmem:[%s453 + $0x28] sm:$0xff]
      %s460 = scalar_lea.vmem %s1, 768
      %v461 = vld [vmem:[%s460] sm:$0xff]
      %v462 = vld [vmem:[%s460 + $0x8] sm:$0xff]
      %v463 = vld [vmem:[%s460 + $0x10] sm:$0xff]
      %v464 = vld [vmem:[%s460 + $0x18] sm:$0xff]
      %v465 = vld [vmem:[%s460 + $0x20] sm:$0xff]
      %v466 = vld [vmem:[%s460 + $0x28] sm:$0xff]
      %v467 = vld [vmem:[%s460 + $0x30] sm:$0xff]
      %v468 = vld [vmem:[%s460 + $0x38] sm:$0xff]
      %v469 = vld [vmem:[%s460 + $0x40] sm:$0xff]
      %v470 = vld [vmem:[%s460 + $0x48] sm:$0xff]
      %v471 = vld [vmem:[%s460 + $0x50] sm:$0xff]
      %v472 = vld [vmem:[%s460 + $0x58] sm:$0xff]
      %v473 = vld [vmem:[%s460 + $0x60] sm:$0xff]
      %v474 = vld [vmem:[%s460 + $0x68] sm:$0xff]
      %v475 = vld [vmem:[%s460 + $0x70] sm:$0xff]
      %v476 = vld [vmem:[%s460 + $0x78] sm:$0xff]
      %v477 = vld [vmem:[%s460 + $0x80] sm:$0xff]
      %v478 = vld [vmem:[%s460 + $0x88] sm:$0xff]
      %v479 = vld [vmem:[%s460 + $0x90] sm:$0xff]
      %v480 = vld [vmem:[%s460 + $0x98] sm:$0xff]
      %v481 = vld [vmem:[%s460 + $0xa0] sm:$0xff]
      %v482 = vld [vmem:[%s460 + $0xa8] sm:$0xff]
      %v483 = vld [vmem:[%s460 + $0xb0] sm:$0xff]
      %v484 = vld [vmem:[%s460 + $0xb8] sm:$0xff]
      %v485 = vld [vmem:[%s460 + $0xc0] sm:$0xff]
      %v486 = vld [vmem:[%s460 + $0xc8] sm:$0xff]
      %v487 = vld [vmem:[%s460 + $0xd0] sm:$0xff]
      %v488 = vld [vmem:[%s460 + $0xd8] sm:$0xff]
      %v489 = vld [vmem:[%s460 + $0xe0] sm:$0xff]
      %v490 = vld [vmem:[%s460 + $0xe8] sm:$0xff]
      %v491 = vld [vmem:[%s460 + $0xf0] sm:$0xff]
      %v492 = vld [vmem:[%s460 + $0xf8] sm:$0xff]
      %v493 = vld [vmem:[%s460 + $0x100] sm:$0xff]
      %v494 = vld [vmem:[%s460 + $0x108] sm:$0xff]
      %v495 = vld [vmem:[%s460 + $0x110] sm:$0xff]
      %v496 = vld [vmem:[%s460 + $0x118] sm:$0xff]
      %v497 = vld [vmem:[%s460 + $0x120] sm:$0xff]
      %v498 = vld [vmem:[%s460 + $0x128] sm:$0xff]
      %v499 = vld [vmem:[%s460 + $0x130] sm:$0xff]
      %v500 = vld [vmem:[%s460 + $0x138] sm:$0xff]
      %v501 = vld [vmem:[%s460 + $0x140] sm:$0xff]
      %v502 = vld [vmem:[%s460 + $0x148] sm:$0xff]
      %v503 = vld [vmem:[%s460 + $0x150] sm:$0xff]
      %v504 = vld [vmem:[%s460 + $0x158] sm:$0xff]
      %v505 = vld [vmem:[%s460 + $0x160] sm:$0xff]
      %v506 = vld [vmem:[%s460 + $0x168] sm:$0xff]
      %v507 = vld [vmem:[%s460 + $0x170] sm:$0xff]
      %v508 = vld [vmem:[%s460 + $0x178] sm:$0xff]
      %509 = vmatpush.msra.mxu0 %v476
      %510 = vmatpush.msra.mxu0 %v475
      %511 = vmatpush.msra.mxu0 %v474
      %512 = vmatpush.msra.mxu0 %v473
      %513 = vmatpush.msra.mxu0 %v472
      %514 = vmatpush.msra.mxu0 %v471
      %515 = vmatpush.msra.mxu0 %v470
      %516 = vmatpush.msra.mxu0 %v469
      %517 = vmatpush.msra.mxu0 %v468
      %518 = vmatpush.msra.mxu0 %v467
      %519 = vmatpush.msra.mxu0 %v466
      %520 = vmatpush.msra.mxu0 %v465
      %521 = vmatpush.msra.mxu0 %v464
      %522 = vmatpush.msra.mxu0 %v463
      %523 = vmatpush.msra.mxu0 %v462
      %524 = vmatpush.msra.mxu0 %v461
      %525 = vmatmul.f32.gmra.mxu0 %v454
      %v526 = vpop.f32.mrf.mxu0
      %v527 = vadd.f32 0.0, %v526
      %528 = vmatmul.f32.gmra.mxu0 %v457
      %v529 = vpop.f32.mrf.mxu0
      %v530 = vadd.f32 0.0, %v529
      %531 = vdwg.mxu0
      %532 = vmatpush.msra.mxu0 %v492
      %533 = vmatpush.msra.mxu0 %v491
      %534 = vmatpush.msra.mxu0 %v490
      %535 = vmatpush.msra.mxu0 %v489
      %536 = vmatpush.msra.mxu0 %v488
      %537 = vmatpush.msra.mxu0 %v487
      %538 = vmatpush.msra.mxu0 %v486
      %539 = vmatpush.msra.mxu0 %v485
      %540 = vmatpush.msra.mxu0 %v484
      %541 = vmatpush.msra.mxu0 %v483
      %542 = vmatpush.msra.mxu0 %v482
      %543 = vmatpush.msra.mxu0 %v481
      %544 = vmatpush.msra.mxu0 %v480
      %545 = vmatpush.msra.mxu0 %v479
      %546 = vmatpush.msra.mxu0 %v478
      %547 = vmatpush.msra.mxu0 %v477
      %548 = vmatmul.f32.gmra.mxu0 %v455
      %v549 = vpop.f32.mrf.mxu0
      %v550 = vadd.f32 %v527, %v549
      %551 = vmatmul.f32.gmra.mxu0 %v458
      %v552 = vpop.f32.mrf.mxu0
      %v553 = vadd.f32 %v530, %v552
      %554 = vdwg.mxu0
      %555 = vmatpush.msra.mxu0 %v508
      %556 = vmatpush.msra.mxu0 %v507
      %557 = vmatpush.msra.mxu0 %v506
      %558 = vmatpush.msra.mxu0 %v505
      %559 = vmatpush.msra.mxu0 %v504
      %560 = vmatpush.msra.mxu0 %v503
      %561 = vmatpush.msra.mxu0 %v502
      %562 = vmatpush.msra.mxu0 %v501
      %563 = vmatpush.msra.mxu0 %v500
      %564 = vmatpush.msra.mxu0 %v499
      %565 = vmatpush.msra.mxu0 %v498
      %566 = vmatpush.msra.mxu0 %v497
      %567 = vmatpush.msra.mxu0 %v496
      %568 = vmatpush.msra.mxu0 %v495
      %569 = vmatpush.msra.mxu0 %v494
      %570 = vmatpush.msra.mxu0 %v493
      %571 = vmatmul.f32.gmra.mxu0 %v456
      %v572 = vpop.f32.mrf.mxu0
      %v573 = vadd.f32 %v550, %v572
      %574 = vmatmul.f32.gmra.mxu0 %v459
      %v575 = vpop.f32.mrf.mxu0
      %v576 = vadd.f32 %v553, %v575
      %577 = vdwg.mxu0
      %v578 = vadd.f32 %v445, %v573
      %v579 = vadd.f32 %v448, %v576
      %v581 = vperm.slane %v195, 0
      %v583 = vadd.f32 %v578, %v581
      %v584 = vadd.f32 %v579, %v581
      %vm585 = vcmp.gt.f32.partialorder %v583, 0.0
      %vm586 = vcmp.gt.f32.partialorder %v584, 0.0
      %v587 = vmul.f32 %v583, 0.2
      %v588 = vmul.f32 %v584, 0.2
      %v589 = vsel %vm585, %v583, %v587
      %v590 = vsel %vm586, %v584, %v588
      %591 = vst [vmem:[%s192] sm:$0xff] %v589
      %592 = vst [vmem:[%s192 + $0x8] sm:$0xff] %v590
      %s593 = smul.u32 2, %s19
      %p594 = scmp.lt.s32.totalorder %s18, 1
      %s595 = scalar_select %p594, %s18, 1
      %p596 = scmp.lt.s32.totalorder %s593, 1
      %s597 = scalar_select %p596, %s593, 1
      %s598 = smul.addr %s595, 2
      %s599 = sadd.s32 %s597, %s598
      %s600 = smul.addr %s599, 8
      %s601 = scalar_lea.vmem %s3, %s600
      // Predicated region
      $region33: #{dis_conv_module_forward.7} parent=31 // pred_check
        %p602 = pneg %p114
      $region34: #{dis_conv_module_forward.7} parent=31 // pred_check_branch
        %604 = sbr.rel (%p602) target = $region36
      $region35: #{dis_conv_module_forward.7} parent=31 // pred_region
        %s605 = smul.u32 2, %s19
      $region36: #{dis_conv_module_forward.7} parent=31 // pred_fallthru
        _
    $region32: #{dis_conv_module_forward.7} parent=5 // pred_fallthru
      _
    %p606 = scmp.le.s32.totalorder 2, %s9
    // Predicated region
    $region37: #{dis_conv_module_forward.7} parent=5 // pred_check
      %p607 = pneg %p606
    $region38: #{dis_conv_module_forward.7} parent=5 // pred_check_branch
      %609 = sbr.rel (%p607) target = $region40
    $region39: #{dis_conv_module_forward.7} parent=5 // pred_region
      %s610 = ssub.s32 %s9, 2
      // Predicated region
      $region41: #{dis_conv_module_forward.7} parent=39 // pred_check
        %p611 = pneg %p120
      $region42: #{dis_conv_module_forward.7} parent=39 // pred_check_branch
        %613 = sbr.rel (%p611) target = $region44
      $region43: #{dis_conv_module_forward.7} parent=39 // pred_region
        %s614 = smul.u32 2, %s21
        %p615 = scmp.lt.s32.totalorder %s20, 1
        %s616 = scalar_select %p615, %s20, 1
        %p617 = scmp.lt.s32.totalorder %s614, 1
        %s618 = scalar_select %p617, %s614, 1
        %s619 = smul.addr %s616, 2
        %s620 = sadd.s32 %s618, %s619
        %s621 = smul.addr %s620, 8
        %s622 = scalar_lea.vmem %s3, %s621
      $region44: #{dis_conv_module_forward.7} parent=39 // pred_fallthru
        _
    $region40: #{dis_conv_module_forward.7} parent=5 // pred_fallthru
      _
  $region6: #{dis_conv_module_forward.7} parent=0 // loop_footer
    %s13 = sadd.s32 1, %s9
  $region7: #{dis_conv_module_forward.7} parent=0 // loop_footer_branch
    %8 = sbr.rel target = $region3
  $region8: #{dis_conv_module_forward.7} parent=0 // loop_exit
    _

</llo_original>
